<compile_context>
chip_gen: v6e
topology: v6e:2x2x1
jax: 0.10.0
libtpu: 0.0.40
codegen_flags: <defaults>
</compile_context>

<pallas_src>
import functools

import jax
import jax.numpy as jnp
from jax import lax
from jax.experimental import pallas as pl
from jax.experimental.pallas import tpu as pltpu

_VMEM_LIMIT = 32 * 1024 * 1024  # bytes; safe on v5e/v6e (128 MiB) and v7x (64 MiB)


# ---------------------------------------------------------------------------
# Kernel A: expand 1x1 + BN + ReLU  ->  depthwise kxk + BN + ReLU  ->  SE pool
# ---------------------------------------------------------------------------
def _front_kernel(*refs, k, stride, h, w, h_out, w_out, c_hid, expand):
    if expand:
        (x_ref, wexp_ref, escale_ref, eshift_ref,
         wdw_ref, dscale_ref, dshift_ref,
         act_ref, psum_ref, pad_ref) = refs
    else:
        (x_ref, wdw_ref, dscale_ref, dshift_ref,
         act_ref, psum_ref, pad_ref) = refs

    pad = k // 2
    x = x_ref[0]                                            # (h, w, c_in) bf16

    # 1) pointwise expansion (bf16 operands, f32 accumulation) + BN + ReLU
    if expand:
        e = jnp.dot(x.reshape(h * w, -1), wexp_ref[...],
                    preferred_element_type=jnp.float32)     # (h*w, c_hid) f32
        e = e * escale_ref[...] + eshift_ref[...]
        e = jnp.maximum(e, 0.0).reshape(h, w, c_hid)
    else:
        e = x.astype(jnp.float32)                           # c_hid == c_in

    # 2) zero-padded copy in VMEM (replaces wrapper-side jnp.pad round trip)
    pad_ref[...] = jnp.zeros_like(pad_ref)
    pad_ref[pad:pad + h, pad:pad + w, :] = e

    # 3) depthwise kxk conv: static k*k tap loop, f32 accumulator
    xp = pad_ref[...]                                       # (hp, wp, c_hid)
    wdw = wdw_ref[...]                                      # (k*k, c_hid) f32
    acc = jnp.zeros((h_out, w_out, c_hid), jnp.float32)
    for di in range(k):
        for dj in range(k):
            patch = lax.slice(
                xp,
                (di, dj, 0),
                (di + stride * (h_out - 1) + 1,
                 dj + stride * (w_out - 1) + 1,
                 c_hid),
                (stride, stride, 1))
            acc = acc + patch * wdw[di * k + dj]

    y = acc * dscale_ref[...] + dshift_ref[...]
    y = jnp.maximum(y, 0.0)                                 # (h_out, w_out, c_hid)

    y2 = y.reshape(h_out * w_out, c_hid)
    act_ref[0] = y2.astype(act_ref.dtype)                   # bf16 activation
    psum_ref[0] = jnp.sum(y2, axis=0, keepdims=True)        # (1, c_hid) f32


# ---------------------------------------------------------------------------
# Kernel B: SE gate (fc1+ReLU, fc2+sigmoid)  ->  gated project 1x1 + BN (+res)
# ---------------------------------------------------------------------------
def _back_kernel(*refs, inv_hw, add_residual):
    if add_residual:
        (act_ref, psum_ref, w1_ref, b1_ref, w2_ref, b2_ref,
         wproj_ref, pscale_ref, pshift_ref, res_ref, out_ref) = refs
    else:
        (act_ref, psum_ref, w1_ref, b1_ref, w2_ref, b2_ref,
         wproj_ref, pscale_ref, pshift_ref, out_ref) = refs

    # squeeze-excitation gate (tiny, f32)
    pooled = psum_ref[0] * inv_hw                           # (1, c_hid)
    hid = jnp.dot(pooled, w1_ref[...],
                  preferred_element_type=jnp.float32) + b1_ref[...]
    hid = jnp.maximum(hid, 0.0)
    gate = jnp.dot(hid, w2_ref[...],
                   preferred_element_type=jnp.float32) + b2_ref[...]
    gate = jax.nn.sigmoid(gate)                             # (1, c_hid)

    # gated projection (bf16 MXU operands, f32 accumulation) + folded BN
    acts = act_ref[0].astype(jnp.float32) * gate            # (tr, c_hid) f32
    z = jnp.dot(acts.astype(jnp.bfloat16), wproj_ref[...],
                preferred_element_type=jnp.float32)         # (tr, c_out)
    z = z * pscale_ref[...] + pshift_ref[...]
    if add_residual:
        z = z + res_ref[0]                                  # f32 residual
    out_ref[0] = z.astype(out_ref.dtype)


# ---------------------------------------------------------------------------
# Full MBConvBlock forward (NCHW in / NCHW out, like the PyTorch module)
# ---------------------------------------------------------------------------
def mbconv_forward(x_nchw, p, *, stride, ksize, expand, use_residual):
    n, c_in, h, w = x_nchw.shape
    x_nhwc = jnp.transpose(x_nchw, (0, 2, 3, 1)).astype(jnp.float32)

    k = ksize
    pad = k // 2
    c_hid = p["w_dw"].shape[-1]
    h_out = (h + 2 * pad - k) // stride + 1
    w_out = (w + 2 * pad - k) // stride + 1
    hw_out = h_out * w_out

    # ---- Kernel A: expand + depthwise + SE pool sums -----------------------
    kern_a = functools.partial(_front_kernel, k=k, stride=stride, h=h, w=w,
                               h_out=h_out, w_out=w_out, c_hid=c_hid,
                               expand=expand)
    ins_a = [x_nhwc.astype(jnp.bfloat16)]
    specs_a = [pl.BlockSpec((1, h, w, c_in), lambda b: (b, 0, 0, 0))]
    if expand:
        ins_a += [p["w_exp"].astype(jnp.bfloat16),
                  p["exp_scale"].reshape(1, -1),
                  p["exp_shift"].reshape(1, -1)]
        specs_a += [pl.BlockSpec((c_in, c_hid), lambda b: (0, 0)),
                    pl.BlockSpec((1, c_hid), lambda b: (0, 0)),
                    pl.BlockSpec((1, c_hid), lambda b: (0, 0))]
    ins_a += [p["w_dw"].reshape(k * k, c_hid),
              p["dw_scale"].reshape(1, -1),
              p["dw_shift"].reshape(1, -1)]
    specs_a += [pl.BlockSpec((k * k, c_hid), lambda b: (0, 0)),
                pl.BlockSpec((1, c_hid), lambda b: (0, 0)),
                pl.BlockSpec((1, c_hid), lambda b: (0, 0))]

    act, psum = pl.pallas_call(
        kern_a,
        out_shape=(jax.ShapeDtypeStruct((n, hw_out, c_hid), jnp.bfloat16),
                   jax.ShapeDtypeStruct((n, 1, c_hid), jnp.float32)),
        grid_spec=pltpu.PrefetchScalarGridSpec(
            num_scalar_prefetch=0, grid=(n,),
            in_specs=specs_a,
            out_specs=[pl.BlockSpec((1, hw_out, c_hid), lambda b: (b, 0, 0)),
                       pl.BlockSpec((1, 1, c_hid), lambda b: (b, 0, 0))],
            scratch_shapes=[pltpu.VMEM((h + 2 * pad, w + 2 * pad, c_hid),
                                       jnp.float32)]),
        compiler_params=pltpu.CompilerParams(
            dimension_semantics=("parallel",),
            vmem_limit_bytes=_VMEM_LIMIT),
    )(*ins_a)

    # ---- Kernel B: SE gate + project + BN (+ residual) ---------------------
    tr = 128 if hw_out % 128 == 0 else hw_out          # row tile (lane-major)
    n_t = hw_out // tr
    c_sq = p["w_se1"].shape[1]
    c_out = p["w_proj"].shape[1]

    kern_b = functools.partial(_back_kernel, inv_hw=1.0 / float(hw_out),
                               add_residual=use_residual)
    ins_b = [act, psum,
             p["w_se1"], p["b_se1"].reshape(1, -1),
             p["w_se2"], p["b_se2"].reshape(1, -1),
             p["w_proj"].astype(jnp.bfloat16),
             p["proj_scale"].reshape(1, -1),
             p["proj_shift"].reshape(1, -1)]
    specs_b = [pl.BlockSpec((1, tr, c_hid), lambda b, t: (b, t, 0)),
               pl.BlockSpec((1, 1, c_hid), lambda b, t: (b, 0, 0)),
               pl.BlockSpec((c_hid, c_sq), lambda b, t: (0, 0)),
               pl.BlockSpec((1, c_sq), lambda b, t: (0, 0)),
               pl.BlockSpec((c_sq, c_hid), lambda b, t: (0, 0)),
               pl.BlockSpec((1, c_hid), lambda b, t: (0, 0)),
               pl.BlockSpec((c_hid, c_out), lambda b, t: (0, 0)),
               pl.BlockSpec((1, c_out), lambda b, t: (0, 0)),
               pl.BlockSpec((1, c_out), lambda b, t: (0, 0))]
    if use_residual:
        # stride == 1 and c_in == c_out here, so the input lines up 1:1.
        ins_b.append(x_nhwc.reshape(n, h * w, c_in))
        specs_b.append(pl.BlockSpec((1, tr, c_in), lambda b, t: (b, t, 0)))

    out = pl.pallas_call(
        kern_b,
        out_shape=jax.ShapeDtypeStruct((n, hw_out, c_out), jnp.float32),
        grid_spec=pltpu.PrefetchScalarGridSpec(
            num_scalar_prefetch=0, grid=(n, n_t),
            in_specs=specs_b,
            out_specs=pl.BlockSpec((1, tr, c_out), lambda b, t: (b, t, 0))),
        compiler_params=pltpu.CompilerParams(
            dimension_semantics=("parallel", "parallel"),
            vmem_limit_bytes=_VMEM_LIMIT),
    )(*ins_b)

    out = out.reshape(n, h_out, w_out, c_out)
    return jnp.transpose(out, (0, 3, 1, 2))                 # -> NCHW


# ---------------------------------------------------------------------------
# Pure-JAX reference (lax.conv, f32) for validation
# ---------------------------------------------------------------------------
def ref_mbconv(x_nchw, p, *, stride, ksize, expand, use_residual):
    dn = ("NHWC", "HWIO", "NHWC")
    x = jnp.transpose(x_nchw, (0, 2, 3, 1)).astype(jnp.float32)
    out = x
    if expand:
        out = lax.conv_general_dilated(out, p["w_exp"][None, None],
                                       (1, 1), "VALID", dimension_numbers=dn)
        out = jnp.maximum(out * p["exp_scale"] + p["exp_shift"], 0.0)
    pad = ksize // 2
    c = out.shape[-1]
    dw = p["w_dw"].reshape(ksize, ksize, 1, c)
    out = lax.conv_general_dilated(out, dw, (stride, stride),
                                   [(pad, pad), (pad, pad)],
                                   dimension_numbers=dn,
                                   feature_group_count=c)
    out = jnp.maximum(out * p["dw_scale"] + p["dw_shift"], 0.0)
    pooled = jnp.mean(out, axis=(1, 2), keepdims=True)
    hid = jnp.maximum(jnp.einsum("nijc,cs->nijs", pooled, p["w_se1"])
                      + p["b_se1"], 0.0)
    gate = jax.nn.sigmoid(jnp.einsum("nijs,sc->nijc", hid, p["w_se2"])
                          + p["b_se2"])
    out = out * gate
    out = lax.conv_general_dilated(out, p["w_proj"][None, None],
                                   (1, 1), "VALID", dimension_numbers=dn)
    out = out * p["proj_scale"] + p["proj_shift"]
    if use_residual:
        out = out + x
    return jnp.transpose(out, (0, 3, 1, 2))


# ---------------------------------------------------------------------------
# Deterministic parameter init + folded BN (eval mode)
# ---------------------------------------------------------------------------
def fold_bn(key, c, eps=1e-5):
    k1, k2, k3, k4 = jax.random.split(key, 4)
    gamma = jax.random.uniform(k1, (c,), jnp.float32, 0.8, 1.2)
    beta = 0.1 * jax.random.normal(k2, (c,), jnp.float32)
    mean = 0.1 * jax.random.normal(k3, (c,), jnp.float32)
    var = jax.random.uniform(k4, (c,), jnp.float32, 0.5, 1.5)
    scale = gamma / jnp.sqrt(var + eps)
    shift = beta - mean * scale
    return scale, shift


def make_params(key, c_in, c_out, expand_ratio, ksize, squeeze_ratio=0.25):
    c_hid = c_in * expand_ratio
    c_sq = max(1, int(c_hid * squeeze_ratio))
    ks = jax.random.split(key, 10)
    p = {}
    p["w_exp"] = 0.1 * jax.random.normal(ks[0], (c_in, c_hid), jnp.float32)
    p["exp_scale"], p["exp_shift"] = fold_bn(ks[1], c_hid)
    p["w_dw"] = 0.1 * jax.random.normal(ks[2], (ksize, ksize, c_hid), jnp.float32)
    p["dw_scale"], p["dw_shift"] = fold_bn(ks[3], c_hid)
    p["w_se1"] = 0.1 * jax.random.normal(ks[4], (c_hid, c_sq), jnp.float32)
    p["b_se1"] = 0.1 * jax.random.normal(ks[5], (c_sq,), jnp.float32)
    p["w_se2"] = 0.1 * jax.random.normal(ks[6], (c_sq, c_hid), jnp.float32)
    p["b_se2"] = 0.1 * jax.random.normal(ks[7], (c_hid,), jnp.float32)
    p["w_proj"] = 0.1 * jax.random.normal(ks[8], (c_hid, c_out), jnp.float32)
    p["proj_scale"], p["proj_shift"] = fold_bn(ks[9], c_out)
    return p


if __name__ == "__main__":
    # MBConvBlock(in_channels=8, out_channels=8, expand_ratio=4, stride=1,
    #             kernel_size=3)  ->  hidden=32, squeeze=8, residual path on.
    N, C_IN, H, W = 2, 8, 16, 16
    C_OUT, EXPAND_RATIO, STRIDE, KSIZE = 8, 4, 1, 3
    expand = (C_IN != C_IN * EXPAND_RATIO)
    use_residual = (STRIDE == 1 and C_IN == C_OUT)

    key = jax.random.PRNGKey(0)
    kx, kp = jax.random.split(key)
    x = jax.random.normal(kx, (N, C_IN, H, W), jnp.float32)   # NCHW like PyTorch
    params = make_params(kp, C_IN, C_OUT, EXPAND_RATIO, KSIZE)

    out = jax.block_until_ready(
        mbconv_forward(x, params, stride=STRIDE, ksize=KSIZE,
                       expand=expand, use_residual=use_residual))
    ref = jax.block_until_ready(
        ref_mbconv(x, params, stride=STRIDE, ksize=KSIZE,
                   expand=expand, use_residual=use_residual))

    assert out.shape == (N, C_OUT, H // STRIDE, W // STRIDE), out.shape
    max_err = float(jnp.max(jnp.abs(out - ref)))
    # bf16 matmul operands / bf16 inter-stage activation vs f32 reference.
    assert jnp.allclose(out, ref, rtol=2e-2, atol=2e-2), max_err
    print("KERNEL_OK")
</pallas_src>

<mosaic_0001>
module attributes {stable_mosaic.version = 11 : i64} {
  func.func @_front_kernel(%arg0: i32, %arg1: memref<1x16x16x8xbf16, #tpu.memory_space<vmem>>, %arg2: memref<8x32xbf16, #tpu.memory_space<vmem>>, %arg3: memref<1x32xf32, #tpu.memory_space<vmem>>, %arg4: memref<1x32xf32, #tpu.memory_space<vmem>>, %arg5: memref<9x32xf32, #tpu.memory_space<vmem>>, %arg6: memref<1x32xf32, #tpu.memory_space<vmem>>, %arg7: memref<1x32xf32, #tpu.memory_space<vmem>>, %arg8: memref<1x256x32xbf16, #tpu.memory_space<vmem>>, %arg9: memref<1x1x32xf32, #tpu.memory_space<vmem>>, %arg10: memref<18x18x32xf32, #tpu.memory_space<vmem>>) attributes {dimension_semantics = [#tpu.dimension_semantics<parallel>], iteration_bounds = array<i64: 2>, scalar_prefetch = 0 : i64, scratch_operands = 1 : i64, tpu.core_type = #tpu.core_type<tc>, window_params = [{transform_indices = @transform_0, window_bounds = array<i64: 1, 16, 16, 8>}, {pipeline_mode = #tpu.pipeline_mode<synchronous>, transform_indices = @transform_1, window_bounds = array<i64: 8, 32>}, {pipeline_mode = #tpu.pipeline_mode<synchronous>, transform_indices = @transform_2, window_bounds = array<i64: 1, 32>}, {pipeline_mode = #tpu.pipeline_mode<synchronous>, transform_indices = @transform_3, window_bounds = array<i64: 1, 32>}, {pipeline_mode = #tpu.pipeline_mode<synchronous>, transform_indices = @transform_4, window_bounds = array<i64: 9, 32>}, {pipeline_mode = #tpu.pipeline_mode<synchronous>, transform_indices = @transform_5, window_bounds = array<i64: 1, 32>}, {pipeline_mode = #tpu.pipeline_mode<synchronous>, transform_indices = @transform_6, window_bounds = array<i64: 1, 32>}, {transform_indices = @transform_7, window_bounds = array<i64: 1, 256, 32>}, {transform_indices = @transform_8, window_bounds = array<i64: 1, 1, 32>}]} {
    %c0 = arith.constant 0 : index
    %c0_0 = arith.constant 0 : index
    %c0_1 = arith.constant 0 : index
    %c0_2 = arith.constant 0 : index
    %0 = vector.load %arg1[%c0, %c0_0, %c0_1, %c0_2] : memref<1x16x16x8xbf16, #tpu.memory_space<vmem>>, vector<1x16x16x8xbf16>
    %1 = vector.shape_cast %0 : vector<1x16x16x8xbf16> to vector<16x16x8xbf16>
    %2 = vector.shape_cast %1 : vector<16x16x8xbf16> to vector<256x8xbf16>
    %c0_3 = arith.constant 0 : index
    %c0_4 = arith.constant 0 : index
    %3 = vector.load %arg2[%c0_3, %c0_4] : memref<8x32xbf16, #tpu.memory_space<vmem>>, vector<8x32xbf16>
    %cst = arith.constant dense<0.000000e+00> : vector<256x32xf32>
    %4 = tpu.matmul %2, %3, %cst {dimension_numbers = #tpu.dot_dimension_numbers<[1], [0], [0], [1], [0, 0, 1, 1], [], []>} : vector<256x8xbf16>, vector<8x32xbf16>, vector<256x32xf32> -> vector<256x32xf32>
    %c0_5 = arith.constant 0 : index
    %c0_6 = arith.constant 0 : index
    %5 = vector.load %arg3[%c0_5, %c0_6] : memref<1x32xf32, #tpu.memory_space<vmem>>, vector<1x32xf32>
    %6 = vector.broadcast %5 : vector<1x32xf32> to vector<256x32xf32>
    %7 = arith.mulf %4, %6 : vector<256x32xf32>
    %c0_7 = arith.constant 0 : index
    %c0_8 = arith.constant 0 : index
    %8 = vector.load %arg4[%c0_7, %c0_8] : memref<1x32xf32, #tpu.memory_space<vmem>>, vector<1x32xf32>
    %9 = vector.broadcast %8 : vector<1x32xf32> to vector<256x32xf32>
    %10 = arith.addf %7, %9 : vector<256x32xf32>
    %cst_9 = arith.constant 0.000000e+00 : f32
    %11 = vector.broadcast %cst_9 : f32 to vector<256x32xf32>
    %12 = arith.maximumf %10, %11 : vector<256x32xf32>
    %13 = vector.shape_cast %12 : vector<256x32xf32> to vector<16x16x32xf32>
    %cst_10 = arith.constant 0.000000e+00 : f32
    %14 = vector.broadcast %cst_10 : f32 to vector<18x18x32xf32>
    %c0_11 = arith.constant 0 : index
    %c0_12 = arith.constant 0 : index
    %c0_13 = arith.constant 0 : index
    %15 = vector.load %arg10[%c0_11, %c0_12, %c0_13] : memref<18x18x32xf32, #tpu.memory_space<vmem>>, vector<18x18x32xf32>
    tpu.vector_store %arg10[%c0_11, %c0_12, %c0_13], %14 {strides = array<i32>} : memref<18x18x32xf32, #tpu.memory_space<vmem>>, vector<18x18x32xf32>,
    %c1 = arith.constant 1 : index
    %c1_14 = arith.constant 1 : index
    %c0_15 = arith.constant 0 : index
    %16 = vector.load %arg10[%c1, %c1_14, %c0_15] : memref<18x18x32xf32, #tpu.memory_space<vmem>>, vector<16x16x32xf32>
    tpu.vector_store %arg10[%c1, %c1_14, %c0_15], %13 {strides = array<i32>} : memref<18x18x32xf32, #tpu.memory_space<vmem>>, vector<16x16x32xf32>,
    %c0_16 = arith.constant 0 : index
    %c0_17 = arith.constant 0 : index
    %c0_18 = arith.constant 0 : index
    %17 = vector.load %arg10[%c0_16, %c0_17, %c0_18] : memref<18x18x32xf32, #tpu.memory_space<vmem>>, vector<18x18x32xf32>
    %c0_19 = arith.constant 0 : index
    %c0_20 = arith.constant 0 : index
    %18 = vector.load %arg5[%c0_19, %c0_20] : memref<9x32xf32, #tpu.memory_space<vmem>>, vector<9x32xf32>
    %cst_21 = arith.constant 0.000000e+00 : f32
    %19 = vector.broadcast %cst_21 : f32 to vector<16x16x32xf32>
    %20 = vector.extract_strided_slice %17 {offsets = [0, 0, 0], sizes = [16, 16, 32], strides = [1, 1, 1]} : vector<18x18x32xf32> to vector<16x16x32xf32>
    %21 = vector.extract_strided_slice %18 {offsets = [0, 0], sizes = [1, 32], strides = [1, 1]} : vector<9x32xf32> to vector<1x32xf32>
    %22 = vector.shape_cast %21 : vector<1x32xf32> to vector<32xf32>
    %23 = vector.shape_cast %22 : vector<32xf32> to vector<1x1x32xf32>
    %24 = vector.broadcast %23 : vector<1x1x32xf32> to vector<16x16x32xf32>
    %25 = arith.mulf %20, %24 : vector<16x16x32xf32>
    %26 = arith.addf %19, %25 : vector<16x16x32xf32>
    %27 = vector.extract_strided_slice %17 {offsets = [0, 1, 0], sizes = [16, 16, 32], strides = [1, 1, 1]} : vector<18x18x32xf32> to vector<16x16x32xf32>
    %28 = vector.extract_strided_slice %18 {offsets = [1, 0], sizes = [1, 32], strides = [1, 1]} : vector<9x32xf32> to vector<1x32xf32>
    %29 = vector.shape_cast %28 : vector<1x32xf32> to vector<32xf32>
    %30 = vector.shape_cast %29 : vector<32xf32> to vector<1x1x32xf32>
    %31 = vector.broadcast %30 : vector<1x1x32xf32> to vector<16x16x32xf32>
    %32 = arith.mulf %27, %31 : vector<16x16x32xf32>
    %33 = arith.addf %26, %32 : vector<16x16x32xf32>
    %34 = vector.extract_strided_slice %17 {offsets = [0, 2, 0], sizes = [16, 16, 32], strides = [1, 1, 1]} : vector<18x18x32xf32> to vector<16x16x32xf32>
    %35 = vector.extract_strided_slice %18 {offsets = [2, 0], sizes = [1, 32], strides = [1, 1]} : vector<9x32xf32> to vector<1x32xf32>
    %36 = vector.shape_cast %35 : vector<1x32xf32> to vector<32xf32>
    %37 = vector.shape_cast %36 : vector<32xf32> to vector<1x1x32xf32>
    %38 = vector.broadcast %37 : vector<1x1x32xf32> to vector<16x16x32xf32>
    %39 = arith.mulf %34, %38 : vector<16x16x32xf32>
    %40 = arith.addf %33, %39 : vector<16x16x32xf32>
    %41 = vector.extract_strided_slice %17 {offsets = [1, 0, 0], sizes = [16, 16, 32], strides = [1, 1, 1]} : vector<18x18x32xf32> to vector<16x16x32xf32>
    %42 = vector.extract_strided_slice %18 {offsets = [3, 0], sizes = [1, 32], strides = [1, 1]} : vector<9x32xf32> to vector<1x32xf32>
    %43 = vector.shape_cast %42 : vector<1x32xf32> to vector<32xf32>
    %44 = vector.shape_cast %43 : vector<32xf32> to vector<1x1x32xf32>
    %45 = vector.broadcast %44 : vector<1x1x32xf32> to vector<16x16x32xf32>
    %46 = arith.mulf %41, %45 : vector<16x16x32xf32>
    %47 = arith.addf %40, %46 : vector<16x16x32xf32>
    %48 = vector.extract_strided_slice %17 {offsets = [1, 1, 0], sizes = [16, 16, 32], strides = [1, 1, 1]} : vector<18x18x32xf32> to vector<16x16x32xf32>
    %49 = vector.extract_strided_slice %18 {offsets = [4, 0], sizes = [1, 32], strides = [1, 1]} : vector<9x32xf32> to vector<1x32xf32>
    %50 = vector.shape_cast %49 : vector<1x32xf32> to vector<32xf32>
    %51 = vector.shape_cast %50 : vector<32xf32> to vector<1x1x32xf32>
    %52 = vector.broadcast %51 : vector<1x1x32xf32> to vector<16x16x32xf32>
    %53 = arith.mulf %48, %52 : vector<16x16x32xf32>
    %54 = arith.addf %47, %53 : vector<16x16x32xf32>
    %55 = vector.extract_strided_slice %17 {offsets = [1, 2, 0], sizes = [16, 16, 32], strides = [1, 1, 1]} : vector<18x18x32xf32> to vector<16x16x32xf32>
    %56 = vector.extract_strided_slice %18 {offsets = [5, 0], sizes = [1, 32], strides = [1, 1]} : vector<9x32xf32> to vector<1x32xf32>
    %57 = vector.shape_cast %56 : vector<1x32xf32> to vector<32xf32>
    %58 = vector.shape_cast %57 : vector<32xf32> to vector<1x1x32xf32>
    %59 = vector.broadcast %58 : vector<1x1x32xf32> to vector<16x16x32xf32>
    %60 = arith.mulf %55, %59 : vector<16x16x32xf32>
    %61 = arith.addf %54, %60 : vector<16x16x32xf32>
    %62 = vector.extract_strided_slice %17 {offsets = [2, 0, 0], sizes = [16, 16, 32], strides = [1, 1, 1]} : vector<18x18x32xf32> to vector<16x16x32xf32>
    %63 = vector.extract_strided_slice %18 {offsets = [6, 0], sizes = [1, 32], strides = [1, 1]} : vector<9x32xf32> to vector<1x32xf32>
    %64 = vector.shape_cast %63 : vector<1x32xf32> to vector<32xf32>
    %65 = vector.shape_cast %64 : vector<32xf32> to vector<1x1x32xf32>
    %66 = vector.broadcast %65 : vector<1x1x32xf32> to vector<16x16x32xf32>
    %67 = arith.mulf %62, %66 : vector<16x16x32xf32>
    %68 = arith.addf %61, %67 : vector<16x16x32xf32>
    %69 = vector.extract_strided_slice %17 {offsets = [2, 1, 0], sizes = [16, 16, 32], strides = [1, 1, 1]} : vector<18x18x32xf32> to vector<16x16x32xf32>
    %70 = vector.extract_strided_slice %18 {offsets = [7, 0], sizes = [1, 32], strides = [1, 1]} : vector<9x32xf32> to vector<1x32xf32>
    %71 = vector.shape_cast %70 : vector<1x32xf32> to vector<32xf32>
    %72 = vector.shape_cast %71 : vector<32xf32> to vector<1x1x32xf32>
    %73 = vector.broadcast %72 : vector<1x1x32xf32> to vector<16x16x32xf32>
    %74 = arith.mulf %69, %73 : vector<16x16x32xf32>
    %75 = arith.addf %68, %74 : vector<16x16x32xf32>
    %76 = vector.extract_strided_slice %17 {offsets = [2, 2, 0], sizes = [16, 16, 32], strides = [1, 1, 1]} : vector<18x18x32xf32> to vector<16x16x32xf32>
    %77 = vector.extract_strided_slice %18 {offsets = [8, 0], sizes = [1, 32], strides = [1, 1]} : vector<9x32xf32> to vector<1x32xf32>
    %78 = vector.shape_cast %77 : vector<1x32xf32> to vector<32xf32>
    %79 = vector.shape_cast %78 : vector<32xf32> to vector<1x1x32xf32>
    %80 = vector.broadcast %79 : vector<1x1x32xf32> to vector<16x16x32xf32>
    %81 = arith.mulf %76, %80 : vector<16x16x32xf32>
    %82 = arith.addf %75, %81 : vector<16x16x32xf32>
    %c0_22 = arith.constant 0 : index
    %c0_23 = arith.constant 0 : index
    %83 = vector.load %arg6[%c0_22, %c0_23] : memref<1x32xf32, #tpu.memory_space<vmem>>, vector<1x32xf32>
    %84 = vector.shape_cast %83 : vector<1x32xf32> to vector<1x1x32xf32>
    %85 = vector.broadcast %84 : vector<1x1x32xf32> to vector<16x16x32xf32>
    %86 = arith.mulf %82, %85 : vector<16x16x32xf32>
    %c0_24 = arith.constant 0 : index
    %c0_25 = arith.constant 0 : index
    %87 = vector.load %arg7[%c0_24, %c0_25] : memref<1x32xf32, #tpu.memory_space<vmem>>, vector<1x32xf32>
    %88 = vector.shape_cast %87 : vector<1x32xf32> to vector<1x1x32xf32>
    %89 = vector.broadcast %88 : vector<1x1x32xf32> to vector<16x16x32xf32>
    %90 = arith.addf %86, %89 : vector<16x16x32xf32>
    %cst_26 = arith.constant 0.000000e+00 : f32
    %91 = vector.broadcast %cst_26 : f32 to vector<16x16x32xf32>
    %92 = arith.maximumf %90, %91 : vector<16x16x32xf32>
    %93 = vector.shape_cast %92 : vector<16x16x32xf32> to vector<256x32xf32>
    %94 = arith.truncf %93 : vector<256x32xf32> to vector<256x32xbf16>
    %c0_27 = arith.constant 0 : index
    %c0_28 = arith.constant 0 : index
    %c0_29 = arith.constant 0 : index
    %95 = vector.load %arg8[%c0_27, %c0_28, %c0_29] : memref<1x256x32xbf16, #tpu.memory_space<vmem>>, vector<1x256x32xbf16>
    %96 = vector.shape_cast %95 : vector<1x256x32xbf16> to vector<256x32xbf16>
    %97 = vector.shape_cast %94 : vector<256x32xbf16> to vector<1x256x32xbf16>
    tpu.vector_store %arg8[%c0_27, %c0_28, %c0_29], %97 {strides = array<i32>} : memref<1x256x32xbf16, #tpu.memory_space<vmem>>, vector<1x256x32xbf16>,
    %cst_30 = arith.constant dense<0.000000e+00> : vector<32xf32>
    %98 = vector.multi_reduction <add>, %93, %cst_30 [0] : vector<256x32xf32> to vector<32xf32>
    %99 = vector.shape_cast %98 : vector<32xf32> to vector<1x32xf32>
    %c0_31 = arith.constant 0 : index
    %c0_32 = arith.constant 0 : index
    %c0_33 = arith.constant 0 : index
    %100 = vector.load %arg9[%c0_31, %c0_32, %c0_33] : memref<1x1x32xf32, #tpu.memory_space<vmem>>, vector<1x1x32xf32>
    %101 = vector.shape_cast %100 : vector<1x1x32xf32> to vector<1x32xf32>
    %102 = vector.shape_cast %99 : vector<1x32xf32> to vector<1x1x32xf32>
    tpu.vector_store %arg9[%c0_31, %c0_32, %c0_33], %102 {strides = array<i32>} : memref<1x1x32xf32, #tpu.memory_space<vmem>>, vector<1x1x32xf32>,
    return
  }
  func.func @transform_0(%arg0: i32) -> (i32, i32, i32, i32) {
    %c0_i32 = arith.constant 0 : i32
    %c0_i32_0 = arith.constant 0 : i32
    %c0_i32_1 = arith.constant 0 : i32
    %c0_i32_2 = arith.constant 0 : i32
    return %arg0, %c0_i32, %c0_i32_0, %c0_i32_1 : i32, i32, i32, i32
  }
  func.func @transform_1(%arg0: i32) -> (i32, i32) {
    %c0_i32 = arith.constant 0 : i32
    %c0_i32_0 = arith.constant 0 : i32
    %c0_i32_1 = arith.constant 0 : i32
    return %c0_i32, %c0_i32_0 : i32, i32
  }
  func.func @transform_2(%arg0: i32) -> (i32, i32) {
    %c0_i32 = arith.constant 0 : i32
    %c0_i32_0 = arith.constant 0 : i32
    %c0_i32_1 = arith.constant 0 : i32
    return %c0_i32, %c0_i32_0 : i32, i32
  }
  func.func @transform_3(%arg0: i32) -> (i32, i32) {
    %c0_i32 = arith.constant 0 : i32
    %c0_i32_0 = arith.constant 0 : i32
    %c0_i32_1 = arith.constant 0 : i32
    return %c0_i32, %c0_i32_0 : i32, i32
  }
  func.func @transform_4(%arg0: i32) -> (i32, i32) {
    %c0_i32 = arith.constant 0 : i32
    %c0_i32_0 = arith.constant 0 : i32
    %c0_i32_1 = arith.constant 0 : i32
    return %c0_i32, %c0_i32_0 : i32, i32
  }
  func.func @transform_5(%arg0: i32) -> (i32, i32) {
    %c0_i32 = arith.constant 0 : i32
    %c0_i32_0 = arith.constant 0 : i32
    %c0_i32_1 = arith.constant 0 : i32
    return %c0_i32, %c0_i32_0 : i32, i32
  }
  func.func @transform_6(%arg0: i32) -> (i32, i32) {
    %c0_i32 = arith.constant 0 : i32
    %c0_i32_0 = arith.constant 0 : i32
    %c0_i32_1 = arith.constant 0 : i32
    return %c0_i32, %c0_i32_0 : i32, i32
  }
  func.func @transform_7(%arg0: i32) -> (i32, i32, i32) {
    %c0_i32 = arith.constant 0 : i32
    %c0_i32_0 = arith.constant 0 : i32
    %c0_i32_1 = arith.constant 0 : i32
    return %arg0, %c0_i32, %c0_i32_0 : i32, i32, i32
  }
  func.func @transform_8(%arg0: i32) -> (i32, i32, i32) {
    %c0_i32 = arith.constant 0 : i32
    %c0_i32_0 = arith.constant 0 : i32
    %c0_i32_1 = arith.constant 0 : i32
    return %arg0, %c0_i32, %c0_i32_0 : i32, i32, i32
  }
}

</mosaic_0001>

<llo_original>
// kernel: tpu_custom_call.1
$region0: #{tpu_custom_call.1}
  #allocation0 [shape = 'u32[]', space=smem, size = 0x4, offset = 0x4, fixed_abs, tag = 'smem constant byte address 0x4 - core index']
  #allocation1 [shape = 'u32[144,128]{1,0:T(1,128)}', space=vmem, size = 0x12000, scoped, tag = 'internal scratch']
  #allocation2 [shape = 'f32[18,18,32]{2,1,0:T(8,128)}', space=vmem, size = 0x36000, scoped, tag = 'scratch operand']
  %s0 = inlined_call_operand.vmem [shape: bf16[2,16,16,8], index: 0, kind: input, shape index: {}]
  %s1 = inlined_call_operand.vmem [shape: bf16[8,32], index: 1, kind: input, shape index: {}]
  %s2 = inlined_call_operand.vmem [shape: f32[1,32], index: 2, kind: input, shape index: {}]
  %s3 = inlined_call_operand.vmem [shape: f32[1,32], index: 3, kind: input, shape index: {}]
  %s4 = inlined_call_operand.vmem [shape: f32[9,32], index: 4, kind: input, shape index: {}]
  %s5 = inlined_call_operand.vmem [shape: f32[1,32], index: 5, kind: input, shape index: {}]
  %s6 = inlined_call_operand.vmem [shape: f32[1,32], index: 6, kind: input, shape index: {}]
  %s7 = inlined_call_operand.vmem [shape: bf16[2,256,32], index: 7, kind: output, shape index: {0}]
  %s8 = inlined_call_operand.hbm [shape: f32[2,1,32], index: 8, kind: output, shape index: {1}]
  %9 = xla_tuple %s7, %s8
  %s10 = sld [smem:[#allocation0]]
  $region69: #{tpu_custom_call.1} parent=0
    _
  %s12 = ssub.s32 1, %s10
  %s13 = scalar_select 0, %s12, %s10
  $region1: #{tpu_custom_call.1} parent=0
    #allocation3 [shape = 'u8[1024]{0}', space=vmem, size = 0x400, scoped, tag = 'output window, operand 1']
    #allocation4 [shape = 's32[2]{0}', space=sflag, size = 0x8, scoped, tag = 'scoped memory for tpu_custom_call.1']
    %14 = vsyncpa [#allocation4], 0
    %s15 = scalar_lea.sflag [#allocation4], 1
    %16 = vsyncpa %s15, 0
    loop: start=0, step=1, limit=4
    $region2: #{tpu_custom_call.1} parent=1 // loop_pre_header
      _
    $region3: #{tpu_custom_call.1} parent=1 // loop_header
      %s18 = sphi 0, %s22
      %p19 = scmp.ge.s32.totalorder %s18, 4
      %s28 = sphi 0, %s30
      %s31 = sphi 0, %s28
      %s32 = sphi 0, %s31
      %s48 = sphi 0, %s32
      %s52 = sphi 0, %s52
      %s54 = sphi 0, %s52
      %s55 = sphi 0, %s54
      %s69 = sphi 0, %s55
      %s73 = sphi 0, %s73
      %s75 = sphi 0, %s73
      %s76 = sphi 0, %s75
      %s90 = sphi 0, %s76
      %s94 = sphi 0, %s94
      %s96 = sphi 0, %s94
      %s97 = sphi 0, %s96
      %s111 = sphi 0, %s97
      %s115 = sphi 0, %s115
      %s117 = sphi 0, %s115
      %s118 = sphi 0, %s117
      %s132 = sphi 0, %s118
      %s136 = sphi 0, %s136
      %s138 = sphi 0, %s136
      %s139 = sphi 0, %s138
      %s153 = sphi 0, %s139
      %s157 = sphi 0, %s157
      %s159 = sphi 0, %s157
      %s160 = sphi 0, %s159
      %s174 = sphi 0, %s160
      %s180 = sphi 0, %s182
      %s183 = sphi 0, %s180
      %s184 = sphi 0, %s183
      %s200 = sphi 0, %s184
      %s206 = sphi 0, %s208
      %s209 = sphi 0, %s206
      %s210 = sphi 0, %s209
      %s226 = sphi 0, %s210
    $region4: #{tpu_custom_call.1} parent=1 // loop_header_branch
      %21 = sbr.rel (%p19) target = $region8
    $region5: #{tpu_custom_call.1} parent=1 // loop_body
      %s23 = ssub.s32 %s18, 1
      %s24 = ssub.s32 %s18, 2
      %s25 = sadd.s32 %s18, 1
      %s26 = ssub.s32 %s18, %s25
      %p27 = scmp.eq.s32.totalorder %s26, 0
      %s29 = sadd.s32 %s28, 1
      %s30 = scalar_select %p27, %s28, %s29
      %p33 = pneg %p27
      %p34 = scmp.eq.s32.totalorder %s18, 1
      %p35 = por %p33, %p34
      %p36 = scmp.ne.s32.totalorder %s28, %s31
      %p37 = scmp.eq.s32.totalorder %s18, 0
      %p38 = por %p36, %p37
      %p39 = scmp.ne.s32.totalorder %s28, %s31
      %p40 = scmp.eq.s32.totalorder %s23, 1
      %p41 = por %p39, %p40
      %p42 = scmp.ne.s32.totalorder %s31, %s32
      %p43 = scmp.eq.s32.totalorder %s23, 0
      %p44 = por %p42, %p43
      %p45 = scmp.ne.s32.totalorder %s31, %s32
      %p46 = scmp.eq.s32.totalorder %s24, 1
      %p47 = por %p45, %p46
      %p49 = scmp.ne.s32.totalorder %s32, %s48
      %p50 = scmp.eq.s32.totalorder %s24, 0
      %p51 = por %p49, %p50
      %s53 = sadd.s32 %s52, 1
      %p56 = scmp.eq.s32.totalorder %s18, 1
      %p57 = scmp.ne.s32.totalorder %s52, %s54
      %p58 = scmp.eq.s32.totalorder %s18, 0
      %p59 = por %p57, %p58
      %p60 = scmp.ne.s32.totalorder %s52, %s54
      %p61 = scmp.eq.s32.totalorder %s23, 1
      %p62 = por %p60, %p61
      %p63 = scmp.ne.s32.totalorder %s54, %s55
      %p64 = scmp.eq.s32.totalorder %s23, 0
      %p65 = por %p63, %p64
      %p66 = scmp.ne.s32.totalorder %s54, %s55
      %p67 = scmp.eq.s32.totalorder %s24, 1
      %p68 = por %p66, %p67
      %p70 = scmp.ne.s32.totalorder %s55, %s69
      %p71 = scmp.eq.s32.totalorder %s24, 0
      %p72 = por %p70, %p71
      %s74 = sadd.s32 %s73, 1
      %p77 = scmp.eq.s32.totalorder %s18, 1
      %p78 = scmp.ne.s32.totalorder %s73, %s75
      %p79 = scmp.eq.s32.totalorder %s18, 0
      %p80 = por %p78, %p79
      %p81 = scmp.ne.s32.totalorder %s73, %s75
      %p82 = scmp.eq.s32.totalorder %s23, 1
      %p83 = por %p81, %p82
      %p84 = scmp.ne.s32.totalorder %s75, %s76
      %p85 = scmp.eq.s32.totalorder %s23, 0
      %p86 = por %p84, %p85
      %p87 = scmp.ne.s32.totalorder %s75, %s76
      %p88 = scmp.eq.s32.totalorder %s24, 1
      %p89 = por %p87, %p88
      %p91 = scmp.ne.s32.totalorder %s76, %s90
      %p92 = scmp.eq.s32.totalorder %s24, 0
      %p93 = por %p91, %p92
      %s95 = sadd.s32 %s94, 1
      %p98 = scmp.eq.s32.totalorder %s18, 1
      %p99 = scmp.ne.s32.totalorder %s94, %s96
      %p100 = scmp.eq.s32.totalorder %s18, 0
      %p101 = por %p99, %p100
      %p102 = scmp.ne.s32.totalorder %s94, %s96
      %p103 = scmp.eq.s32.totalorder %s23, 1
      %p104 = por %p102, %p103
      %p105 = scmp.ne.s32.totalorder %s96, %s97
      %p106 = scmp.eq.s32.totalorder %s23, 0
      %p107 = por %p105, %p106
      %p108 = scmp.ne.s32.totalorder %s96, %s97
      %p109 = scmp.eq.s32.totalorder %s24, 1
      %p110 = por %p108, %p109
      %p112 = scmp.ne.s32.totalorder %s97, %s111
      %p113 = scmp.eq.s32.totalorder %s24, 0
      %p114 = por %p112, %p113
      %s116 = sadd.s32 %s115, 1
      %p119 = scmp.eq.s32.totalorder %s18, 1
      %p120 = scmp.ne.s32.totalorder %s115, %s117
      %p121 = scmp.eq.s32.totalorder %s18, 0
      %p122 = por %p120, %p121
      %p123 = scmp.ne.s32.totalorder %s115, %s117
      %p124 = scmp.eq.s32.totalorder %s23, 1
      %p125 = por %p123, %p124
      %p126 = scmp.ne.s32.totalorder %s117, %s118
      %p127 = scmp.eq.s32.totalorder %s23, 0
      %p128 = por %p126, %p127
      %p129 = scmp.ne.s32.totalorder %s117, %s118
      %p130 = scmp.eq.s32.totalorder %s24, 1
      %p131 = por %p129, %p130
      %p133 = scmp.ne.s32.totalorder %s118, %s132
      %p134 = scmp.eq.s32.totalorder %s24, 0
      %p135 = por %p133, %p134
      %s137 = sadd.s32 %s136, 1
      %p140 = scmp.eq.s32.totalorder %s18, 1
      %p141 = scmp.ne.s32.totalorder %s136, %s138
      %p142 = scmp.eq.s32.totalorder %s18, 0
      %p143 = por %p141, %p142
      %p144 = scmp.ne.s32.totalorder %s136, %s138
      %p145 = scmp.eq.s32.totalorder %s23, 1
      %p146 = por %p144, %p145
      %p147 = scmp.ne.s32.totalorder %s138, %s139
      %p148 = scmp.eq.s32.totalorder %s23, 0
      %p149 = por %p147, %p148
      %p150 = scmp.ne.s32.totalorder %s138, %s139
      %p151 = scmp.eq.s32.totalorder %s24, 1
      %p152 = por %p150, %p151
      %p154 = scmp.ne.s32.totalorder %s139, %s153
      %p155 = scmp.eq.s32.totalorder %s24, 0
      %p156 = por %p154, %p155
      %s158 = sadd.s32 %s157, 1
      %p161 = scmp.eq.s32.totalorder %s18, 1
      %p162 = scmp.ne.s32.totalorder %s157, %s159
      %p163 = scmp.eq.s32.totalorder %s18, 0
      %p164 = por %p162, %p163
      %p165 = scmp.ne.s32.totalorder %s157, %s159
      %p166 = scmp.eq.s32.totalorder %s23, 1
      %p167 = por %p165, %p166
      %p168 = scmp.ne.s32.totalorder %s159, %s160
      %p169 = scmp.eq.s32.totalorder %s23, 0
      %p170 = por %p168, %p169
      %p171 = scmp.ne.s32.totalorder %s159, %s160
      %p172 = scmp.eq.s32.totalorder %s24, 1
      %p173 = por %p171, %p172
      %p175 = scmp.ne.s32.totalorder %s160, %s174
      %p176 = scmp.eq.s32.totalorder %s24, 0
      %p177 = por %p175, %p176
      %s178 = ssub.s32 %s18, %s25
      %p179 = scmp.eq.s32.totalorder %s178, 0
      %s181 = sadd.s32 %s180, 1
      %s182 = scalar_select %p179, %s180, %s181
      %p185 = pneg %p179
      %p186 = scmp.eq.s32.totalorder %s18, 1
      %p187 = por %p185, %p186
      %p188 = scmp.ne.s32.totalorder %s180, %s183
      %p189 = scmp.eq.s32.totalorder %s18, 0
      %p190 = por %p188, %p189
      %p191 = scmp.ne.s32.totalorder %s180, %s183
      %p192 = scmp.eq.s32.totalorder %s23, 1
      %p193 = por %p191, %p192
      %p194 = scmp.ne.s32.totalorder %s183, %s184
      %p195 = scmp.eq.s32.totalorder %s23, 0
      %p196 = por %p194, %p195
      %p197 = scmp.ne.s32.totalorder %s183, %s184
      %p198 = scmp.eq.s32.totalorder %s24, 1
      %p199 = por %p197, %p198
      %p201 = scmp.ne.s32.totalorder %s184, %s200
      %p202 = scmp.eq.s32.totalorder %s24, 0
      %p203 = por %p201, %p202
      %s204 = ssub.s32 %s18, %s25
      %p205 = scmp.eq.s32.totalorder %s204, 0
      %s207 = sadd.s32 %s206, 1
      %s208 = scalar_select %p205, %s206, %s207
      %p211 = pneg %p205
      %p212 = scmp.eq.s32.totalorder %s18, 1
      %p213 = por %p211, %p212
      %p214 = scmp.ne.s32.totalorder %s206, %s209
      %p215 = scmp.eq.s32.totalorder %s18, 0
      %p216 = por %p214, %p215
      %p217 = scmp.ne.s32.totalorder %s206, %s209
      %p218 = scmp.eq.s32.totalorder %s23, 1
      %p219 = por %p217, %p218
      %p220 = scmp.ne.s32.totalorder %s209, %s210
      %p221 = scmp.eq.s32.totalorder %s23, 0
      %p222 = por %p220, %p221
      %p223 = scmp.ne.s32.totalorder %s209, %s210
      %p224 = scmp.eq.s32.totalorder %s24, 1
      %p225 = por %p223, %p224
      %p227 = scmp.ne.s32.totalorder %s210, %s226
      %p228 = scmp.eq.s32.totalorder %s24, 0
      %p229 = por %p227, %p228
      %p230 = scmp.le.s32.totalorder 1, %s18
      %p231 = scmp.lt.s32.totalorder %s18, 3
      %p232 = pnand %p230, %p231
      %p233 = pneg %p232
      // Predicated region
      $region9: #{tpu_custom_call.1} parent=5 // pred_check
        _
      $region10: #{tpu_custom_call.1} parent=5 // pred_check_branch
        %235 = sbr.rel (%p232) target = $region12
      $region11: #{tpu_custom_call.1} parent=5 // pred_region
        %s236 = ssub.s32 %s18, 1
        // Predicated region
        $region13: #{tpu_custom_call.1} parent=11 // pred_check
          %p237 = pneg %p65
        $region14: #{tpu_custom_call.1} parent=11 // pred_check_branch
          %239 = sbr.rel (%p237) target = $region16
        $region15: #{tpu_custom_call.1} parent=11 // pred_region
          _
        $region16: #{tpu_custom_call.1} parent=11 // pred_fallthru
          _
        // Predicated region
        $region17: #{tpu_custom_call.1} parent=11 // pred_check
          %p240 = pneg %p86
        $region18: #{tpu_custom_call.1} parent=11 // pred_check_branch
          %242 = sbr.rel (%p240) target = $region20
        $region19: #{tpu_custom_call.1} parent=11 // pred_region
          _
        $region20: #{tpu_custom_call.1} parent=11 // pred_fallthru
          _
        // Predicated region
        $region21: #{tpu_custom_call.1} parent=11 // pred_check
          %p243 = pneg %p107
        $region22: #{tpu_custom_call.1} parent=11 // pred_check_branch
          %245 = sbr.rel (%p243) target = $region24
        $region23: #{tpu_custom_call.1} parent=11 // pred_region
          _
        $region24: #{tpu_custom_call.1} parent=11 // pred_fallthru
          _
        // Predicated region
        $region25: #{tpu_custom_call.1} parent=11 // pred_check
          %p246 = pneg %p128
        $region26: #{tpu_custom_call.1} parent=11 // pred_check_branch
          %248 = sbr.rel (%p246) target = $region28
        $region27: #{tpu_custom_call.1} parent=11 // pred_region
          _
        $region28: #{tpu_custom_call.1} parent=11 // pred_fallthru
          _
        // Predicated region
        $region29: #{tpu_custom_call.1} parent=11 // pred_check
          %p249 = pneg %p149
        $region30: #{tpu_custom_call.1} parent=11 // pred_check_branch
          %251 = sbr.rel (%p249) target = $region32
        $region31: #{tpu_custom_call.1} parent=11 // pred_region
          _
        $region32: #{tpu_custom_call.1} parent=11 // pred_fallthru
          _
        // Predicated region
        $region33: #{tpu_custom_call.1} parent=11 // pred_check
          %p252 = pneg %p170
        $region34: #{tpu_custom_call.1} parent=11 // pred_check_branch
          %254 = sbr.rel (%p252) target = $region36
        $region35: #{tpu_custom_call.1} parent=11 // pred_region
          _
        $region36: #{tpu_custom_call.1} parent=11 // pred_fallthru
          _
      $region12: #{tpu_custom_call.1} parent=5 // pred_fallthru
        _
      %p255 = scmp.lt.s32.totalorder %s18, 2
      // Predicated region
      $region37: #{tpu_custom_call.1} parent=5 // pred_check
        %p256 = pneg %p255
      $region38: #{tpu_custom_call.1} parent=5 // pred_check_branch
        %258 = sbr.rel (%p256) target = $region40
      $region39: #{tpu_custom_call.1} parent=5 // pred_region
        // Predicated region
        $region41: #{tpu_custom_call.1} parent=39 // pred_check
          %p259 = pneg %p38
        $region42: #{tpu_custom_call.1} parent=39 // pred_check_branch
          %261 = sbr.rel (%p259) target = $region44
        $region43: #{tpu_custom_call.1} parent=39 // pred_region
          %p262 = scmp.lt.s32.totalorder %s18, 1
          %s263 = scalar_select %p262, %s18, 1
          %s264 = smul.addr %s263, 32
          %s265 = smul.addr %s264, 4
          %s266 = scalar_lea.vmem %s0, %s265
        $region44: #{tpu_custom_call.1} parent=39 // pred_fallthru
          _
      $region40: #{tpu_custom_call.1} parent=5 // pred_fallthru
        _
      %p267 = scmp.le.s32.totalorder 1, %s18
      %p268 = scmp.lt.s32.totalorder %s18, 3
      %p269 = pnand %p267, %p268
      %p270 = pneg %p269
      // Predicated region
      $region45: #{tpu_custom_call.1} parent=5 // pred_check
        _
      $region46: #{tpu_custom_call.1} parent=5 // pred_check_branch
        %272 = sbr.rel (%p269) target = $region48
      $region47: #{tpu_custom_call.1} parent=5 // pred_region
        %s273 = ssub.s32 %s18, 1
        %p274 = scmp.lt.s32.totalorder %s23, 1
        %s275 = scalar_select %p274, %s23, 1
        %s276 = smul.addr %s275, 32
        %s277 = smul.addr %s276, 4
        %s278 = scalar_lea.vmem %s0, %s277
        %p279 = pneg %p44
        %p280 = pneg %p41
        %p281 = pneg %p65
        %p282 = pneg %p62
        %p283 = pneg %p86
        %p284 = pneg %p83
        %p285 = pneg %p107
        %p286 = pneg %p104
        %p287 = pneg %p128
        %p288 = pneg %p125
        %p289 = pneg %p149
        %p290 = pneg %p146
        %p291 = pneg %p170
        %p292 = pneg %p167
        %p293 = pneg %p196
        %p294 = pneg %p193
        %p295 = scmp.lt.s32.totalorder %s23, 1
        %s296 = scalar_select %p295, %s23, 1
        %s297 = smul.addr %s296, 32
        %s298 = smul.addr %s297, 4
        %s299 = scalar_lea.vmem %s7, %s298
        %p300 = pneg %p222
        %p301 = pneg %p219
        %s302 = sand.u32 %s209, 1
        %s303 = scalar_lea.sflag [#allocation4], %s302
        %s304 = sand.u32 %s209, 1
        %s305 = scalar_lea.vmem [#allocation3], %s304
        %p306 = scmp.lt.s32.totalorder %s23, 1
        %s307 = scalar_select %p306, %s23, 1
        %s308 = smul.addr %s307, 32
        %s309 = smul.addr %s308, 4
        %s310 = scalar_lea.vmem %s0, %s309
        %p311 = scmp.lt.s32.totalorder %s23, 1
        %s312 = scalar_select %p311, %s23, 1
        %s313 = smul.addr %s312, 32
        %s314 = smul.addr %s313, 4
        %s315 = scalar_lea.vmem %s7, %s314
        %v317 = vld [vmem:[%s310] sm:$0xf]
        %v318 = vld [vmem:[%s310 + $0x4] sm:$0xf]
        %v319 = vld [vmem:[%s310 + $0x8] sm:$0xf]
        %v320 = vld [vmem:[%s310 + $0xc] sm:$0xf]
        %v321 = vld [vmem:[%s310 + $0x10] sm:$0xf]
        %v322 = vld [vmem:[%s310 + $0x14] sm:$0xf]
        %v323 = vld [vmem:[%s310 + $0x18] sm:$0xf]
        %v324 = vld [vmem:[%s310 + $0x1c] sm:$0xf]
        %v325 = vld [vmem:[%s310 + $0x20] sm:$0xf]
        %v326 = vld [vmem:[%s310 + $0x24] sm:$0xf]
        %v327 = vld [vmem:[%s310 + $0x28] sm:$0xf]
        %v328 = vld [vmem:[%s310 + $0x2c] sm:$0xf]
        %v329 = vld [vmem:[%s310 + $0x30] sm:$0xf]
        %v330 = vld [vmem:[%s310 + $0x34] sm:$0xf]
        %v331 = vld [vmem:[%s310 + $0x38] sm:$0xf]
        %v332 = vld [vmem:[%s310 + $0x3c] sm:$0xf]
        %v333 = vld [vmem:[%s310 + $0x40] sm:$0xf]
        %v334 = vld [vmem:[%s310 + $0x44] sm:$0xf]
        %v335 = vld [vmem:[%s310 + $0x48] sm:$0xf]
        %v336 = vld [vmem:[%s310 + $0x4c] sm:$0xf]
        %v337 = vld [vmem:[%s310 + $0x50] sm:$0xf]
        %v338 = vld [vmem:[%s310 + $0x54] sm:$0xf]
        %v339 = vld [vmem:[%s310 + $0x58] sm:$0xf]
        %v340 = vld [vmem:[%s310 + $0x5c] sm:$0xf]
        %v341 = vld [vmem:[%s310 + $0x60] sm:$0xf]
        %v342 = vld [vmem:[%s310 + $0x64] sm:$0xf]
        %v343 = vld [vmem:[%s310 + $0x68] sm:$0xf]
        %v344 = vld [vmem:[%s310 + $0x6c] sm:$0xf]
        %v345 = vld [vmem:[%s310 + $0x70] sm:$0xf]
        %v346 = vld [vmem:[%s310 + $0x74] sm:$0xf]
        %v347 = vld [vmem:[%s310 + $0x78] sm:$0xf]
        %v348 = vld [vmem:[%s310 + $0x7c] sm:$0xf]
        %v349 = vld [vmem:[%s1] sm:$0xf]
        %v382 = vunpack.c.l.b16 %v317
        %v383 = vunpack.c.l.b16 %v318
        %v384 = vunpack.c.l.b16 %v319
        %v385 = vunpack.c.l.b16 %v320
        %v386 = vunpack.c.l.b16 %v321
        %v387 = vunpack.c.l.b16 %v322
        %v388 = vunpack.c.l.b16 %v323
        %v389 = vunpack.c.l.b16 %v324
        %v390 = vunpack.c.l.b16 %v325
        %v391 = vunpack.c.l.b16 %v326
        %v392 = vunpack.c.l.b16 %v327
        %v393 = vunpack.c.l.b16 %v328
        %v394 = vunpack.c.l.b16 %v329
        %v395 = vunpack.c.l.b16 %v330
        %v396 = vunpack.c.l.b16 %v331
        %v397 = vunpack.c.l.b16 %v332
        %v398 = vunpack.c.l.b16 %v333
        %v399 = vunpack.c.l.b16 %v334
        %v400 = vunpack.c.l.b16 %v335
        %v401 = vunpack.c.l.b16 %v336
        %v402 = vunpack.c.l.b16 %v337
        %v403 = vunpack.c.l.b16 %v338
        %v404 = vunpack.c.l.b16 %v339
        %v405 = vunpack.c.l.b16 %v340
        %v406 = vunpack.c.l.b16 %v341
        %v407 = vunpack.c.l.b16 %v342
        %v408 = vunpack.c.l.b16 %v343
        %v409 = vunpack.c.l.b16 %v344
        %v410 = vunpack.c.l.b16 %v345
        %v411 = vunpack.c.l.b16 %v346
        %v412 = vunpack.c.l.b16 %v347
        %v413 = vunpack.c.l.b16 %v348
        %v414 = vpack.c.b16 %v383, %v382
        %v415 = vpack.c.b16 %v385, %v384
        %v416 = vpack.c.b16 %v387, %v386
        %v417 = vpack.c.b16 %v389, %v388
        %v418 = vpack.c.b16 %v391, %v390
        %v419 = vpack.c.b16 %v393, %v392
        %v420 = vpack.c.b16 %v395, %v394
        %v421 = vpack.c.b16 %v397, %v396
        %v422 = vpack.c.b16 %v399, %v398
        %v423 = vpack.c.b16 %v401, %v400
        %v424 = vpack.c.b16 %v403, %v402
        %v425 = vpack.c.b16 %v405, %v404
        %v426 = vpack.c.b16 %v407, %v406
        %v427 = vpack.c.b16 %v409, %v408
        %v428 = vpack.c.b16 %v411, %v410
        %v429 = vpack.c.b16 %v413, %v412
        %vm430 = vcmask 64512
        %v432 = vsel %vm430, %v414, 0
        %v435 = vsel %vm430, %v415, 0
        %v438 = vsel %vm430, %v416, 0
        %v441 = vsel %vm430, %v417, 0
        %v444 = vsel %vm430, %v418, 0
        %v447 = vsel %vm430, %v419, 0
        %v450 = vsel %vm430, %v420, 0
        %v453 = vsel %vm430, %v421, 0
        %v456 = vsel %vm430, %v422, 0
        %v459 = vsel %vm430, %v423, 0
        %v462 = vsel %vm430, %v424, 0
        %v465 = vsel %vm430, %v425, 0
        %v468 = vsel %vm430, %v426, 0
        %v471 = vsel %vm430, %v427, 0
        %v474 = vsel %vm430, %v428, 0
        %v477 = vsel %vm430, %v429, 0
        %vm479 = vcmask 1043456
        %v481 = vsel %vm479, %v349, 0
        %483 = vmatprep.subr.bf16.mxu0 0
        %484 = vmatpush1.bf16.msra.mxu0 0
        %485 = vmatprep.subr.bf16.mxu0 0
        %486 = vmatpush1.bf16.msra.mxu0 0
        %487 = vmatprep.subr.bf16.mxu0 0
        %488 = vmatpush1.bf16.msra.mxu0 0
        %489 = vmatprep.subr.bf16.mxu0 0
        %490 = vmatpush1.bf16.msra.mxu0 0
        %491 = vmatprep.subr.bf16.mxu0 0
        %492 = vmatpush1.bf16.msra.mxu0 0
        %493 = vmatprep.subr.bf16.mxu0 0
        %494 = vmatpush1.bf16.msra.mxu0 0
        %495 = vmatprep.subr.bf16.mxu0 0
        %496 = vmatpush1.bf16.msra.mxu0 0
        %497 = vmatprep.subr.bf16.mxu0 0
        %498 = vmatpush1.bf16.msra.mxu0 %v481
        %499 = vmatprep.subr.bf16.mxu0 0
        %500 = vmatpush2.bf16.msra.mxu0 0
        %501 = vmatprep.subr.bf16.mxu0 0
        %502 = vmatpush2.bf16.msra.mxu0 0
        %503 = vmatprep.subr.bf16.mxu0 0
        %504 = vmatpush2.bf16.msra.mxu0 0
        %505 = vmatprep.subr.bf16.mxu0 0
        %506 = vmatpush2.bf16.msra.mxu0 0
        %507 = vmatprep.subr.bf16.mxu0 0
        %508 = vmatpush2.bf16.msra.mxu0 0
        %509 = vmatprep.subr.bf16.mxu0 0
        %510 = vmatpush2.bf16.msra.mxu0 0
        %511 = vmatprep.subr.bf16.mxu0 0
        %512 = vmatpush2.bf16.msra.mxu0 0
        %513 = vmatprep.subr.bf16.mxu0 0
        %514 = vmatpush2.bf16.msra.mxu0 0
        %515 = vmatprep.mubr.bf16.mxu0 0
        %516 = vmatmul.mubr.bf16.gmra.mxu0 %v432
        %v517 = vpop.f32.mrf.mxu0
        %v518 = vadd.f32 0.0, %v517
        %v519 = vpop.f32.mrf.mxu0
        %v520 = vpop.f32.mrf.mxu0
        %v521 = vadd.f32 0.0, %v520
        %v522 = vpop.f32.mrf.mxu0
        %523 = vmatprep.mubr.bf16.mxu0 0
        %524 = vmatmul.mubr.bf16.gmra.mxu0 %v435
        %v525 = vpop.f32.mrf.mxu0
        %v526 = vadd.f32 0.0, %v525
        %v527 = vpop.f32.mrf.mxu0
        %v528 = vpop.f32.mrf.mxu0
        %v529 = vadd.f32 0.0, %v528
        %v530 = vpop.f32.mrf.mxu0
        %531 = vmatprep.mubr.bf16.mxu0 0
        %532 = vmatmul.mubr.bf16.gmra.mxu0 %v438
        %v533 = vpop.f32.mrf.mxu0
        %v534 = vadd.f32 0.0, %v533
        %v535 = vpop.f32.mrf.mxu0
        %v536 = vpop.f32.mrf.mxu0
        %v537 = vadd.f32 0.0, %v536
        %v538 = vpop.f32.mrf.mxu0
        %539 = vmatprep.mubr.bf16.mxu0 0
        %540 = vmatmul.mubr.bf16.gmra.mxu0 %v441
        %v541 = vpop.f32.mrf.mxu0
        %v542 = vadd.f32 0.0, %v541
        %v543 = vpop.f32.mrf.mxu0
        %v544 = vpop.f32.mrf.mxu0
        %v545 = vadd.f32 0.0, %v544
        %v546 = vpop.f32.mrf.mxu0
        %547 = vmatprep.mubr.bf16.mxu0 0
        %548 = vmatmul.mubr.bf16.gmra.mxu0 %v444
        %v549 = vpop.f32.mrf.mxu0
        %v550 = vadd.f32 0.0, %v549
        %v551 = vpop.f32.mrf.mxu0
        %v552 = vpop.f32.mrf.mxu0
        %v553 = vadd.f32 0.0, %v552
        %v554 = vpop.f32.mrf.mxu0
        %555 = vmatprep.mubr.bf16.mxu0 0
        %556 = vmatmul.mubr.bf16.gmra.mxu0 %v447
        %v557 = vpop.f32.mrf.mxu0
        %v558 = vadd.f32 0.0, %v557
        %v559 = vpop.f32.mrf.mxu0
        %v560 = vpop.f32.mrf.mxu0
        %v561 = vadd.f32 0.0, %v560
        %v562 = vpop.f32.mrf.mxu0
        %563 = vmatprep.mubr.bf16.mxu0 0
        %564 = vmatmul.mubr.bf16.gmra.mxu0 %v450
        %v565 = vpop.f32.mrf.mxu0
        %v566 = vadd.f32 0.0, %v565
        %v567 = vpop.f32.mrf.mxu0
        %v568 = vpop.f32.mrf.mxu0
        %v569 = vadd.f32 0.0, %v568
        %v570 = vpop.f32.mrf.mxu0
        %571 = vmatprep.mubr.bf16.mxu0 0
        %572 = vmatmul.mubr.bf16.gmra.mxu0 %v453
        %v573 = vpop.f32.mrf.mxu0
        %v574 = vadd.f32 0.0, %v573
        %v575 = vpop.f32.mrf.mxu0
        %v576 = vpop.f32.mrf.mxu0
        %v577 = vadd.f32 0.0, %v576
        %v578 = vpop.f32.mrf.mxu0
        %579 = vmatprep.mubr.bf16.mxu0 0
        %580 = vmatmul.mubr.bf16.gmra.mxu0 %v456
        %v581 = vpop.f32.mrf.mxu0
        %v582 = vadd.f32 0.0, %v581
        %v583 = vpop.f32.mrf.mxu0
        %v584 = vpop.f32.mrf.mxu0
        %v585 = vadd.f32 0.0, %v584
        %v586 = vpop.f32.mrf.mxu0
        %587 = vmatprep.mubr.bf16.mxu0 0
        %588 = vmatmul.mubr.bf16.gmra.mxu0 %v459
        %v589 = vpop.f32.mrf.mxu0
        %v590 = vadd.f32 0.0, %v589
        %v591 = vpop.f32.mrf.mxu0
        %v592 = vpop.f32.mrf.mxu0
        %v593 = vadd.f32 0.0, %v592
        %v594 = vpop.f32.mrf.mxu0
        %595 = vmatprep.mubr.bf16.mxu0 0
        %596 = vmatmul.mubr.bf16.gmra.mxu0 %v462
        %v597 = vpop.f32.mrf.mxu0
        %v598 = vadd.f32 0.0, %v597
        %v599 = vpop.f32.mrf.mxu0
        %v600 = vpop.f32.mrf.mxu0
        %v601 = vadd.f32 0.0, %v600
        %v602 = vpop.f32.mrf.mxu0
        %603 = vmatprep.mubr.bf16.mxu0 0
        %604 = vmatmul.mubr.bf16.gmra.mxu0 %v465
        %v605 = vpop.f32.mrf.mxu0
        %v606 = vadd.f32 0.0, %v605
        %v607 = vpop.f32.mrf.mxu0
        %v608 = vpop.f32.mrf.mxu0
        %v609 = vadd.f32 0.0, %v608
        %v610 = vpop.f32.mrf.mxu0
        %611 = vmatprep.mubr.bf16.mxu0 0
        %612 = vmatmul.mubr.bf16.gmra.mxu0 %v468
        %v613 = vpop.f32.mrf.mxu0
        %v614 = vadd.f32 0.0, %v613
        %v615 = vpop.f32.mrf.mxu0
        %v616 = vpop.f32.mrf.mxu0
        %v617 = vadd.f32 0.0, %v616
        %v618 = vpop.f32.mrf.mxu0
        %619 = vmatprep.mubr.bf16.mxu0 0
        %620 = vmatmul.mubr.bf16.gmra.mxu0 %v471
        %v621 = vpop.f32.mrf.mxu0
        %v622 = vadd.f32 0.0, %v621
        %v623 = vpop.f32.mrf.mxu0
        %v624 = vpop.f32.mrf.mxu0
        %v625 = vadd.f32 0.0, %v624
        %v626 = vpop.f32.mrf.mxu0
        %627 = vmatprep.mubr.bf16.mxu0 0
        %628 = vmatmul.mubr.bf16.gmra.mxu0 %v474
        %v629 = vpop.f32.mrf.mxu0
        %v630 = vadd.f32 0.0, %v629
        %v631 = vpop.f32.mrf.mxu0
        %v632 = vpop.f32.mrf.mxu0
        %v633 = vadd.f32 0.0, %v632
        %v634 = vpop.f32.mrf.mxu0
        %635 = vmatprep.mubr.bf16.mxu0 0
        %636 = vmatmul.mubr.bf16.gmra.mxu0 %v477
        %v637 = vpop.f32.mrf.mxu0
        %v638 = vadd.f32 0.0, %v637
        %v639 = vpop.f32.mrf.mxu0
        %v640 = vpop.f32.mrf.mxu0
        %v641 = vadd.f32 0.0, %v640
        %v642 = vpop.f32.mrf.mxu0
        %643 = vdwg.mxu0
        %v644 = vld [vmem:[%s2] sm:$0x1]
        %v646 = vlaneseq
        %v647 = vshrl.u32 %v646, 7
        %v648 = vsub.s32 0, %v647
        %v649 = vrot.slane %v644, %v648
        %v651 = vmul.f32 %v518, %v649
        %v652 = vmul.f32 %v521, %v649
        %v653 = vmul.f32 %v526, %v649
        %v654 = vmul.f32 %v529, %v649
        %v655 = vmul.f32 %v534, %v649
        %v656 = vmul.f32 %v537, %v649
        %v657 = vmul.f32 %v542, %v649
        %v658 = vmul.f32 %v545, %v649
        %v659 = vmul.f32 %v550, %v649
        %v660 = vmul.f32 %v553, %v649
        %v661 = vmul.f32 %v558, %v649
        %v662 = vmul.f32 %v561, %v649
        %v663 = vmul.f32 %v566, %v649
        %v664 = vmul.f32 %v569, %v649
        %v665 = vmul.f32 %v574, %v649
        %v666 = vmul.f32 %v577, %v649
        %v667 = vmul.f32 %v582, %v649
        %v668 = vmul.f32 %v585, %v649
        %v669 = vmul.f32 %v590, %v649
        %v670 = vmul.f32 %v593, %v649
        %v671 = vmul.f32 %v598, %v649
        %v672 = vmul.f32 %v601, %v649
        %v673 = vmul.f32 %v606, %v649
        %v674 = vmul.f32 %v609, %v649
        %v675 = vmul.f32 %v614, %v649
        %v676 = vmul.f32 %v617, %v649
        %v677 = vmul.f32 %v622, %v649
        %v678 = vmul.f32 %v625, %v649
        %v679 = vmul.f32 %v630, %v649
        %v680 = vmul.f32 %v633, %v649
        %v681 = vmul.f32 %v638, %v649
        %v682 = vmul.f32 %v641, %v649
        %v683 = vld [vmem:[%s3] sm:$0x1]
        %v685 = vlaneseq
        %v686 = vshrl.u32 %v685, 7
        %v687 = vsub.s32 0, %v686
        %v688 = vrot.slane %v683, %v687
        %v690 = vadd.f32 %v651, %v688
        %v691 = vadd.f32 %v652, %v688
        %v692 = vadd.f32 %v653, %v688
        %v693 = vadd.f32 %v654, %v688
        %v694 = vadd.f32 %v655, %v688
        %v695 = vadd.f32 %v656, %v688
        %v696 = vadd.f32 %v657, %v688
        %v697 = vadd.f32 %v658, %v688
        %v698 = vadd.f32 %v659, %v688
        %v699 = vadd.f32 %v660, %v688
        %v700 = vadd.f32 %v661, %v688
        %v701 = vadd.f32 %v662, %v688
        %v702 = vadd.f32 %v663, %v688
        %v703 = vadd.f32 %v664, %v688
        %v704 = vadd.f32 %v665, %v688
        %v705 = vadd.f32 %v666, %v688
        %v706 = vadd.f32 %v667, %v688
        %v707 = vadd.f32 %v668, %v688
        %v708 = vadd.f32 %v669, %v688
        %v709 = vadd.f32 %v670, %v688
        %v710 = vadd.f32 %v671, %v688
        %v711 = vadd.f32 %v672, %v688
        %v712 = vadd.f32 %v673, %v688
        %v713 = vadd.f32 %v674, %v688
        %v714 = vadd.f32 %v675, %v688
        %v715 = vadd.f32 %v676, %v688
        %v716 = vadd.f32 %v677, %v688
        %v717 = vadd.f32 %v678, %v688
        %v718 = vadd.f32 %v679, %v688
        %v719 = vadd.f32 %v680, %v688
        %v720 = vadd.f32 %v681, %v688
        %v721 = vadd.f32 %v682, %v688
        %v722 = vmax.f32 %v690, 0.0
        %v723 = vmax.f32 %v691, 0.0
        %v724 = vmax.f32 %v692, 0.0
        %v725 = vmax.f32 %v693, 0.0
        %v726 = vmax.f32 %v694, 0.0
        %v727 = vmax.f32 %v695, 0.0
        %v728 = vmax.f32 %v696, 0.0
        %v729 = vmax.f32 %v697, 0.0
        %v730 = vmax.f32 %v698, 0.0
        %v731 = vmax.f32 %v699, 0.0
        %v732 = vmax.f32 %v700, 0.0
        %v733 = vmax.f32 %v701, 0.0
        %v734 = vmax.f32 %v702, 0.0
        %v735 = vmax.f32 %v703, 0.0
        %v736 = vmax.f32 %v704, 0.0
        %v737 = vmax.f32 %v705, 0.0
        %v738 = vmax.f32 %v706, 0.0
        %v739 = vmax.f32 %v707, 0.0
        %v740 = vmax.f32 %v708, 0.0
        %v741 = vmax.f32 %v709, 0.0
        %v742 = vmax.f32 %v710, 0.0
        %v743 = vmax.f32 %v711, 0.0
        %v744 = vmax.f32 %v712, 0.0
        %v745 = vmax.f32 %v713, 0.0
        %v746 = vmax.f32 %v714, 0.0
        %v747 = vmax.f32 %v715, 0.0
        %v748 = vmax.f32 %v716, 0.0
        %v749 = vmax.f32 %v717, 0.0
        %v750 = vmax.f32 %v718, 0.0
        %v751 = vmax.f32 %v719, 0.0
        %v752 = vmax.f32 %v720, 0.0
        %v753 = vmax.f32 %v721, 0.0
        %vm754 = vcmask 261120
        %755 = vst.msk [vmem:[#allocation2] sm:$0xff] %vm754, 0.0
        %756 = vst.msk [vmem:[#allocation2 + $0x8] sm:$0xff] %vm754, 0.0
        %vm757 = vcmask 254976
        %758 = vst.msk [vmem:[#allocation2 + $0x10] sm:$0x3] %vm757, 0.0
        %759 = vst.msk [vmem:[#allocation2 + $0x18] sm:$0xff] %vm754, 0.0
        %760 = vst.msk [vmem:[#allocation2 + $0x20] sm:$0xff] %vm754, 0.0
        %761 = vst.msk [vmem:[#allocation2 + $0x28] sm:$0x3] %vm757, 0.0
        %762 = vst.msk [vmem:[#allocation2 + $0x30] sm:$0xff] %vm754, 0.0
        %763 = vst.msk [vmem:[#allocation2 + $0x38] sm:$0xff] %vm754, 0.0
        %764 = vst.msk [vmem:[#allocation2 + $0x40] sm:$0x3] %vm757, 0.0
        %765 = vst.msk [vmem:[#allocation2 + $0x48] sm:$0xff] %vm754, 0.0
        %766 = vst.msk [vmem:[#allocation2 + $0x50] sm:$0xff] %vm754, 0.0
        %767 = vst.msk [vmem:[#allocation2 + $0x58] sm:$0x3] %vm757, 0.0
        %768 = vst.msk [vmem:[#allocation2 + $0x60] sm:$0xff] %vm754, 0.0
        %769 = vst.msk [vmem:[#allocation2 + $0x68] sm:$0xff] %vm754, 0.0
        %770 = vst.msk [vmem:[#allocation2 + $0x70] sm:$0x3] %vm757, 0.0
        %771 = vst.msk [vmem:[#allocation2 + $0x78] sm:$0xff] %vm754, 0.0
        %772 = vst.msk [vmem:[#allocation2 + $0x80] sm:$0xff] %vm754, 0.0
        %773 = vst.msk [vmem:[#allocation2 + $0x88] sm:$0x3] %vm757, 0.0
        %774 = vst.msk [vmem:[#allocation2 + $0x90] sm:$0xff] %vm754, 0.0
        %775 = vst.msk [vmem:[#allocation2 + $0x98] sm:$0xff] %vm754, 0.0
        %776 = vst.msk [vmem:[#allocation2 + $0xa0] sm:$0x3] %vm757, 0.0
        %777 = vst.msk [vmem:[#allocation2 + $0xa8] sm:$0xff] %vm754, 0.0
        %778 = vst.msk [vmem:[#allocation2 + $0xb0] sm:$0xff] %vm754, 0.0
        %779 = vst.msk [vmem:[#allocation2 + $0xb8] sm:$0x3] %vm757, 0.0
        %780 = vst.msk [vmem:[#allocation2 + $0xc0] sm:$0xff] %vm754, 0.0
        %781 = vst.msk [vmem:[#allocation2 + $0xc8] sm:$0xff] %vm754, 0.0
        %782 = vst.msk [vmem:[#allocation2 + $0xd0] sm:$0x3] %vm757, 0.0
        %783 = vst.msk [vmem:[#allocation2 + $0xd8] sm:$0xff] %vm754, 0.0
        %784 = vst.msk [vmem:[#allocation2 + $0xe0] sm:$0xff] %vm754, 0.0
        %785 = vst.msk [vmem:[#allocation2 + $0xe8] sm:$0x3] %vm757, 0.0
        %786 = vst.msk [vmem:[#allocation2 + $0xf0] sm:$0xff] %vm754, 0.0
        %787 = vst.msk [vmem:[#allocation2 + $0xf8] sm:$0xff] %vm754, 0.0
        %788 = vst.msk [vmem:[#allocation2 + $0x100] sm:$0x3] %vm757, 0.0
        %789 = vst.msk [vmem:[#allocation2 + $0x108] sm:$0xff] %vm754, 0.0
        %790 = vst.msk [vmem:[#allocation2 + $0x110] sm:$0xff] %vm754, 0.0
        %791 = vst.msk [vmem:[#allocation2 + $0x118] sm:$0x3] %vm757, 0.0
        %792 = vst.msk [vmem:[#allocation2 + $0x120] sm:$0xff] %vm754, 0.0
        %793 = vst.msk [vmem:[#allocation2 + $0x128] sm:$0xff] %vm754, 0.0
        %794 = vst.msk [vmem:[#allocation2 + $0x130] sm:$0x3] %vm757, 0.0
        %795 = vst.msk [vmem:[#allocation2 + $0x138] sm:$0xff] %vm754, 0.0
        %796 = vst.msk [vmem:[#allocation2 + $0x140] sm:$0xff] %vm754, 0.0
        %797 = vst.msk [vmem:[#allocation2 + $0x148] sm:$0x3] %vm757, 0.0
        %798 = vst.msk [vmem:[#allocation2 + $0x150] sm:$0xff] %vm754, 0.0
        %799 = vst.msk [vmem:[#allocation2 + $0x158] sm:$0xff] %vm754, 0.0
        %800 = vst.msk [vmem:[#allocation2 + $0x160] sm:$0x3] %vm757, 0.0
        %801 = vst.msk [vmem:[#allocation2 + $0x168] sm:$0xff] %vm754, 0.0
        %802 = vst.msk [vmem:[#allocation2 + $0x170] sm:$0xff] %vm754, 0.0
        %803 = vst.msk [vmem:[#allocation2 + $0x178] sm:$0x3] %vm757, 0.0
        %804 = vst.msk [vmem:[#allocation2 + $0x180] sm:$0xff] %vm754, 0.0
        %805 = vst.msk [vmem:[#allocation2 + $0x188] sm:$0xff] %vm754, 0.0
        %806 = vst.msk [vmem:[#allocation2 + $0x190] sm:$0x3] %vm757, 0.0
        %807 = vst.msk [vmem:[#allocation2 + $0x198] sm:$0xff] %vm754, 0.0
        %808 = vst.msk [vmem:[#allocation2 + $0x1a0] sm:$0xff] %vm754, 0.0
        %809 = vst.msk [vmem:[#allocation2 + $0x1a8] sm:$0x3] %vm757, 0.0
        %s810 = scalar_lea.vmem [#allocation2], 24
        %811 = vst.msk [vmem:[%s810 + $0x1] sm:$0xff] %vm754, %v722
        %812 = vst.msk [vmem:[%s810 + $0x9] sm:$0xff] %vm754, %v723
        %813 = vst.msk [vmem:[%s810 + $0x19] sm:$0xff] %vm754, %v724
        %814 = vst.msk [vmem:[%s810 + $0x21] sm:$0xff] %vm754, %v725
        %815 = vst.msk [vmem:[%s810 + $0x31] sm:$0xff] %vm754, %v726
        %816 = vst.msk [vmem:[%s810 + $0x39] sm:$0xff] %vm754, %v727
        %817 = vst.msk [vmem:[%s810 + $0x49] sm:$0xff] %vm754, %v728
        %818 = vst.msk [vmem:[%s810 + $0x51] sm:$0xff] %vm754, %v729
        %819 = vst.msk [vmem:[%s810 + $0x61] sm:$0xff] %vm754, %v730
        %820 = vst.msk [vmem:[%s810 + $0x69] sm:$0xff] %vm754, %v731
        %821 = vst.msk [vmem:[%s810 + $0x79] sm:$0xff] %vm754, %v732
        %822 = vst.msk [vmem:[%s810 + $0x81] sm:$0xff] %vm754, %v733
        %823 = vst.msk [vmem:[%s810 + $0x91] sm:$0xff] %vm754, %v734
        %824 = vst.msk [vmem:[%s810 + $0x99] sm:$0xff] %vm754, %v735
        %825 = vst.msk [vmem:[%s810 + $0xa9] sm:$0xff] %vm754, %v736
        %826 = vst.msk [vmem:[%s810 + $0xb1] sm:$0xff] %vm754, %v737
        %827 = vst.msk [vmem:[%s810 + $0xc1] sm:$0xff] %vm754, %v738
        %828 = vst.msk [vmem:[%s810 + $0xc9] sm:$0xff] %vm754, %v739
        %829 = vst.msk [vmem:[%s810 + $0xd9] sm:$0xff] %vm754, %v740
        %830 = vst.msk [vmem:[%s810 + $0xe1] sm:$0xff] %vm754, %v741
        %831 = vst.msk [vmem:[%s810 + $0xf1] sm:$0xff] %vm754, %v742
        %832 = vst.msk [vmem:[%s810 + $0xf9] sm:$0xff] %vm754, %v743
        %833 = vst.msk [vmem:[%s810 + $0x109] sm:$0xff] %vm754, %v744
        %834 = vst.msk [vmem:[%s810 + $0x111] sm:$0xff] %vm754, %v745
        %835 = vst.msk [vmem:[%s810 + $0x121] sm:$0xff] %vm754, %v746
        %836 = vst.msk [vmem:[%s810 + $0x129] sm:$0xff] %vm754, %v747
        %837 = vst.msk [vmem:[%s810 + $0x139] sm:$0xff] %vm754, %v748
        %838 = vst.msk [vmem:[%s810 + $0x141] sm:$0xff] %vm754, %v749
        %839 = vst.msk [vmem:[%s810 + $0x151] sm:$0xff] %vm754, %v750
        %840 = vst.msk [vmem:[%s810 + $0x159] sm:$0xff] %vm754, %v751
        %841 = vst.msk [vmem:[%s810 + $0x169] sm:$0xff] %vm754, %v752
        %842 = vst.msk [vmem:[%s810 + $0x171] sm:$0xff] %vm754, %v753
        %v843 = vld [vmem:[#allocation2] sm:$0xff]
        %v844 = vld [vmem:[#allocation2 + $0x8] sm:$0xff]
        %v845 = vld [vmem:[#allocation2 + $0x10] sm:$0x3]
        %v846 = vld [vmem:[#allocation2 + $0x18] sm:$0xff]
        %v847 = vld [vmem:[#allocation2 + $0x20] sm:$0xff]
        %v848 = vld [vmem:[#allocation2 + $0x28] sm:$0x3]
        %v849 = vld [vmem:[#allocation2 + $0x30] sm:$0xff]
        %v850 = vld [vmem:[#allocation2 + $0x38] sm:$0xff]
        %v851 = vld [vmem:[#allocation2 + $0x40] sm:$0x3]
        %v852 = vld [vmem:[#allocation2 + $0x48] sm:$0xff]
        %v853 = vld [vmem:[#allocation2 + $0x50] sm:$0xff]
        %v854 = vld [vmem:[#allocation2 + $0x58] sm:$0x3]
        %v855 = vld [vmem:[#allocation2 + $0x60] sm:$0xff]
        %v856 = vld [vmem:[#allocation2 + $0x68] sm:$0xff]
        %v857 = vld [vmem:[#allocation2 + $0x70] sm:$0x3]
        %v858 = vld [vmem:[#allocation2 + $0x78] sm:$0xff]
        %v859 = vld [vmem:[#allocation2 + $0x80] sm:$0xff]
        %v860 = vld [vmem:[#allocation2 + $0x88] sm:$0x3]
        %v861 = vld [vmem:[#allocation2 + $0x90] sm:$0xff]
        %v862 = vld [vmem:[#allocation2 + $0x98] sm:$0xff]
        %v863 = vld [vmem:[#allocation2 + $0xa0] sm:$0x3]
        %v864 = vld [vmem:[#allocation2 + $0xa8] sm:$0xff]
        %v865 = vld [vmem:[#allocation2 + $0xb0] sm:$0xff]
        %v866 = vld [vmem:[#allocation2 + $0xb8] sm:$0x3]
        %v867 = vld [vmem:[#allocation2 + $0xc0] sm:$0xff]
        %v868 = vld [vmem:[#allocation2 + $0xc8] sm:$0xff]
        %v869 = vld [vmem:[#allocation2 + $0xd0] sm:$0x3]
        %v870 = vld [vmem:[#allocation2 + $0xd8] sm:$0xff]
        %v871 = vld [vmem:[#allocation2 + $0xe0] sm:$0xff]
        %v872 = vld [vmem:[#allocation2 + $0xe8] sm:$0x3]
        %v873 = vld [vmem:[#allocation2 + $0xf0] sm:$0xff]
        %v874 = vld [vmem:[#allocation2 + $0xf8] sm:$0xff]
        %v875 = vld [vmem:[#allocation2 + $0x100] sm:$0x3]
        %v876 = vld [vmem:[#allocation2 + $0x108] sm:$0xff]
        %v877 = vld [vmem:[#allocation2 + $0x110] sm:$0xff]
        %v878 = vld [vmem:[#allocation2 + $0x118] sm:$0x3]
        %v879 = vld [vmem:[#allocation2 + $0x120] sm:$0xff]
        %v880 = vld [vmem:[#allocation2 + $0x128] sm:$0xff]
        %v881 = vld [vmem:[#allocation2 + $0x130] sm:$0x3]
        %v882 = vld [vmem:[#allocation2 + $0x138] sm:$0xff]
        %v883 = vld [vmem:[#allocation2 + $0x140] sm:$0xff]
        %v884 = vld [vmem:[#allocation2 + $0x148] sm:$0x3]
        %v885 = vld [vmem:[#allocation2 + $0x150] sm:$0xff]
        %v886 = vld [vmem:[#allocation2 + $0x158] sm:$0xff]
        %v887 = vld [vmem:[#allocation2 + $0x160] sm:$0x3]
        %v888 = vld [vmem:[#allocation2 + $0x168] sm:$0xff]
        %v889 = vld [vmem:[#allocation2 + $0x170] sm:$0xff]
        %v890 = vld [vmem:[#allocation2 + $0x178] sm:$0x3]
        %v891 = vld [vmem:[#allocation2 + $0x180] sm:$0xff]
        %v892 = vld [vmem:[#allocation2 + $0x188] sm:$0xff]
        %v893 = vld [vmem:[#allocation2 + $0x190] sm:$0x3]
        %v894 = vld [vmem:[#allocation2 + $0x198] sm:$0xff]
        %v895 = vld [vmem:[#allocation2 + $0x1a0] sm:$0xff]
        %v896 = vld [vmem:[#allocation2 + $0x1a8] sm:$0x3]
        %v897 = vld [vmem:[%s4] sm:$0xff]
        %v898 = vld [vmem:[%s4 + $0x8] sm:$0x1]
        %v899 = vlaneseq
        %v900 = vshrl.u32 %v899, 7
        %v901 = vsub.s32 0, %v900
        %v902 = vrot.slane %v897, %v901
        %v903 = vmul.f32 %v843, %v902
        %v904 = vmul.f32 %v844, %v902
        %v905 = vmul.f32 %v846, %v902
        %v906 = vmul.f32 %v847, %v902
        %v907 = vmul.f32 %v849, %v902
        %v908 = vmul.f32 %v850, %v902
        %v909 = vmul.f32 %v852, %v902
        %v910 = vmul.f32 %v853, %v902
        %v911 = vmul.f32 %v855, %v902
        %v912 = vmul.f32 %v856, %v902
        %v913 = vmul.f32 %v858, %v902
        %v914 = vmul.f32 %v859, %v902
        %v915 = vmul.f32 %v861, %v902
        %v916 = vmul.f32 %v862, %v902
        %v917 = vmul.f32 %v864, %v902
        %v918 = vmul.f32 %v865, %v902
        %v919 = vmul.f32 %v867, %v902
        %v920 = vmul.f32 %v868, %v902
        %v921 = vmul.f32 %v870, %v902
        %v922 = vmul.f32 %v871, %v902
        %v923 = vmul.f32 %v873, %v902
        %v924 = vmul.f32 %v874, %v902
        %v925 = vmul.f32 %v876, %v902
        %v926 = vmul.f32 %v877, %v902
        %v927 = vmul.f32 %v879, %v902
        %v928 = vmul.f32 %v880, %v902
        %v929 = vmul.f32 %v882, %v902
        %v930 = vmul.f32 %v883, %v902
        %v931 = vmul.f32 %v885, %v902
        %v932 = vmul.f32 %v886, %v902
        %v933 = vmul.f32 %v888, %v902
        %v934 = vmul.f32 %v889, %v902
        %v935 = vadd.f32 %v903, 0.0
        %v936 = vadd.f32 %v904, 0.0
        %v937 = vadd.f32 %v905, 0.0
        %v938 = vadd.f32 %v906, 0.0
        %v939 = vadd.f32 %v907, 0.0
        %v940 = vadd.f32 %v908, 0.0
        %v941 = vadd.f32 %v909, 0.0
        %v942 = vadd.f32 %v910, 0.0
        %v943 = vadd.f32 %v911, 0.0
        %v944 = vadd.f32 %v912, 0.0
        %v945 = vadd.f32 %v913, 0.0
        %v946 = vadd.f32 %v914, 0.0
        %v947 = vadd.f32 %v915, 0.0
        %v948 = vadd.f32 %v916, 0.0
        %v949 = vadd.f32 %v917, 0.0
        %v950 = vadd.f32 %v918, 0.0
        %v951 = vadd.f32 %v919, 0.0
        %v952 = vadd.f32 %v920, 0.0
        %v953 = vadd.f32 %v921, 0.0
        %v954 = vadd.f32 %v922, 0.0
        %v955 = vadd.f32 %v923, 0.0
        %v956 = vadd.f32 %v924, 0.0
        %v957 = vadd.f32 %v925, 0.0
        %v958 = vadd.f32 %v926, 0.0
        %v959 = vadd.f32 %v927, 0.0
        %v960 = vadd.f32 %v928, 0.0
        %v961 = vadd.f32 %v929, 0.0
        %v962 = vadd.f32 %v930, 0.0
        %v963 = vadd.f32 %v931, 0.0
        %v964 = vadd.f32 %v932, 0.0
        %v965 = vadd.f32 %v933, 0.0
        %v966 = vadd.f32 %v934, 0.0
        %v967 = vlaneseq
        %v968 = vshrl.u32 %v967, 7
        %v969 = vsub.s32 1, %v968
        %v970 = vrot.slane %v897, %v969
        %v971 = vmul.f32 %v843, %v970
        %v972 = vmul.f32 %v844, %v970
        %v973 = vmul.f32 %v845, %v970
        %v974 = vmul.f32 %v846, %v970
        %v975 = vmul.f32 %v847, %v970
        %v976 = vmul.f32 %v848, %v970
        %v977 = vmul.f32 %v849, %v970
        %v978 = vmul.f32 %v850, %v970
        %v979 = vmul.f32 %v851, %v970
        %v980 = vmul.f32 %v852, %v970
        %v981 = vmul.f32 %v853, %v970
        %v982 = vmul.f32 %v854, %v970
        %v983 = vmul.f32 %v855, %v970
        %v984 = vmul.f32 %v856, %v970
        %v985 = vmul.f32 %v857, %v970
        %v986 = vmul.f32 %v858, %v970
        %v987 = vmul.f32 %v859, %v970
        %v988 = vmul.f32 %v860, %v970
        %v989 = vmul.f32 %v861, %v970
        %v990 = vmul.f32 %v862, %v970
        %v991 = vmul.f32 %v863, %v970
        %v992 = vmul.f32 %v864, %v970
        %v993 = vmul.f32 %v865, %v970
        %v994 = vmul.f32 %v866, %v970
        %v995 = vmul.f32 %v867, %v970
        %v996 = vmul.f32 %v868, %v970
        %v997 = vmul.f32 %v869, %v970
        %v998 = vmul.f32 %v870, %v970
        %v999 = vmul.f32 %v871, %v970
        %v1000 = vmul.f32 %v872, %v970
        %v1001 = vmul.f32 %v873, %v970
        %v1002 = vmul.f32 %v874, %v970
        %v1003 = vmul.f32 %v875, %v970
        %v1004 = vmul.f32 %v876, %v970
        %v1005 = vmul.f32 %v877, %v970
        %v1006 = vmul.f32 %v878, %v970
        %v1007 = vmul.f32 %v879, %v970
        %v1008 = vmul.f32 %v880, %v970
        %v1009 = vmul.f32 %v881, %v970
        %v1010 = vmul.f32 %v882, %v970
        %v1011 = vmul.f32 %v883, %v970
        %v1012 = vmul.f32 %v884, %v970
        %v1013 = vmul.f32 %v885, %v970
        %v1014 = vmul.f32 %v886, %v970
        %v1015 = vmul.f32 %v887, %v970
        %v1016 = vmul.f32 %v888, %v970
        %v1017 = vmul.f32 %v889, %v970
        %v1018 = vmul.f32 %v890, %v970
        %vm1067 = vcmask 1046528
        %v1068 = vrot.slane %v971, 1
        %v1069 = vrot.slane %v972, 1
        %v1070 = vsel %vm1067, %v1068, %v1069
        %v1071 = vrot.slane %v973, 1
        %v1072 = vsel %vm1067, %v1069, %v1071
        %v1073 = vrot.slane %v974, 1
        %v1074 = vrot.slane %v975, 1
        %v1075 = vsel %vm1067, %v1073, %v1074
        %v1076 = vrot.slane %v976, 1
        %v1077 = vsel %vm1067, %v1074, %v1076
        %v1078 = vrot.slane %v977, 1
        %v1079 = vrot.slane %v978, 1
        %v1080 = vsel %vm1067, %v1078, %v1079
        %v1081 = vrot.slane %v979, 1
        %v1082 = vsel %vm1067, %v1079, %v1081
        %v1083 = vrot.slane %v980, 1
        %v1084 = vrot.slane %v981, 1
        %v1085 = vsel %vm1067, %v1083, %v1084
        %v1086 = vrot.slane %v982, 1
        %v1087 = vsel %vm1067, %v1084, %v1086
        %v1088 = vrot.slane %v983, 1
        %v1089 = vrot.slane %v984, 1
        %v1090 = vsel %vm1067, %v1088, %v1089
        %v1091 = vrot.slane %v985, 1
        %v1092 = vsel %vm1067, %v1089, %v1091
        %v1093 = vrot.slane %v986, 1
        %v1094 = vrot.slane %v987, 1
        %v1095 = vsel %vm1067, %v1093, %v1094
        %v1096 = vrot.slane %v988, 1
        %v1097 = vsel %vm1067, %v1094, %v1096
        %v1098 = vrot.slane %v989, 1
        %v1099 = vrot.slane %v990, 1
        %v1100 = vsel %vm1067, %v1098, %v1099
        %v1101 = vrot.slane %v991, 1
        %v1102 = vsel %vm1067, %v1099, %v1101
        %v1103 = vrot.slane %v992, 1
        %v1104 = vrot.slane %v993, 1
        %v1105 = vsel %vm1067, %v1103, %v1104
        %v1106 = vrot.slane %v994, 1
        %v1107 = vsel %vm1067, %v1104, %v1106
        %v1108 = vrot.slane %v995, 1
        %v1109 = vrot.slane %v996, 1
        %v1110 = vsel %vm1067, %v1108, %v1109
        %v1111 = vrot.slane %v997, 1
        %v1112 = vsel %vm1067, %v1109, %v1111
        %v1113 = vrot.slane %v998, 1
        %v1114 = vrot.slane %v999, 1
        %v1115 = vsel %vm1067, %v1113, %v1114
        %v1116 = vrot.slane %v1000, 1
        %v1117 = vsel %vm1067, %v1114, %v1116
        %v1118 = vrot.slane %v1001, 1
        %v1119 = vrot.slane %v1002, 1
        %v1120 = vsel %vm1067, %v1118, %v1119
        %v1121 = vrot.slane %v1003, 1
        %v1122 = vsel %vm1067, %v1119, %v1121
        %v1123 = vrot.slane %v1004, 1
        %v1124 = vrot.slane %v1005, 1
        %v1125 = vsel %vm1067, %v1123, %v1124
        %v1126 = vrot.slane %v1006, 1
        %v1127 = vsel %vm1067, %v1124, %v1126
        %v1128 = vrot.slane %v1007, 1
        %v1129 = vrot.slane %v1008, 1
        %v1130 = vsel %vm1067, %v1128, %v1129
        %v1131 = vrot.slane %v1009, 1
        %v1132 = vsel %vm1067, %v1129, %v1131
        %v1133 = vrot.slane %v1010, 1
        %v1134 = vrot.slane %v1011, 1
        %v1135 = vsel %vm1067, %v1133, %v1134
        %v1136 = vrot.slane %v1012, 1
        %v1137 = vsel %vm1067, %v1134, %v1136
        %v1138 = vrot.slane %v1013, 1
        %v1139 = vrot.slane %v1014, 1
        %v1140 = vsel %vm1067, %v1138, %v1139
        %v1141 = vrot.slane %v1015, 1
        %v1142 = vsel %vm1067, %v1139, %v1141
        %v1143 = vrot.slane %v1016, 1
        %v1144 = vrot.slane %v1017, 1
        %v1145 = vsel %vm1067, %v1143, %v1144
        %v1146 = vrot.slane %v1018, 1
        %v1147 = vsel %vm1067, %v1144, %v1146
        %v1180 = vadd.f32 %v935, %v1070
        %v1181 = vadd.f32 %v936, %v1072
        %v1182 = vadd.f32 %v937, %v1075
        %v1183 = vadd.f32 %v938, %v1077
        %v1184 = vadd.f32 %v939, %v1080
        %v1185 = vadd.f32 %v940, %v1082
        %v1186 = vadd.f32 %v941, %v1085
        %v1187 = vadd.f32 %v942, %v1087
        %v1188 = vadd.f32 %v943, %v1090
        %v1189 = vadd.f32 %v944, %v1092
        %v1190 = vadd.f32 %v945, %v1095
        %v1191 = vadd.f32 %v946, %v1097
        %v1192 = vadd.f32 %v947, %v1100
        %v1193 = vadd.f32 %v948, %v1102
        %v1194 = vadd.f32 %v949, %v1105
        %v1195 = vadd.f32 %v950, %v1107
        %v1196 = vadd.f32 %v951, %v1110
        %v1197 = vadd.f32 %v952, %v1112
        %v1198 = vadd.f32 %v953, %v1115
        %v1199 = vadd.f32 %v954, %v1117
        %v1200 = vadd.f32 %v955, %v1120
        %v1201 = vadd.f32 %v956, %v1122
        %v1202 = vadd.f32 %v957, %v1125
        %v1203 = vadd.f32 %v958, %v1127
        %v1204 = vadd.f32 %v959, %v1130
        %v1205 = vadd.f32 %v960, %v1132
        %v1206 = vadd.f32 %v961, %v1135
        %v1207 = vadd.f32 %v962, %v1137
        %v1208 = vadd.f32 %v963, %v1140
        %v1209 = vadd.f32 %v964, %v1142
        %v1210 = vadd.f32 %v965, %v1145
        %v1211 = vadd.f32 %v966, %v1147
        %v1212 = vlaneseq
        %v1213 = vshrl.u32 %v1212, 7
        %v1214 = vsub.s32 2, %v1213
        %v1215 = vrot.slane %v897, %v1214
        %v1216 = vmul.f32 %v843, %v1215
        %v1217 = vmul.f32 %v844, %v1215
        %v1218 = vmul.f32 %v845, %v1215
        %v1219 = vmul.f32 %v846, %v1215
        %v1220 = vmul.f32 %v847, %v1215
        %v1221 = vmul.f32 %v848, %v1215
        %v1222 = vmul.f32 %v849, %v1215
        %v1223 = vmul.f32 %v850, %v1215
        %v1224 = vmul.f32 %v851, %v1215
        %v1225 = vmul.f32 %v852, %v1215
        %v1226 = vmul.f32 %v853, %v1215
        %v1227 = vmul.f32 %v854, %v1215
        %v1228 = vmul.f32 %v855, %v1215
        %v1229 = vmul.f32 %v856, %v1215
        %v1230 = vmul.f32 %v857, %v1215
        %v1231 = vmul.f32 %v858, %v1215
        %v1232 = vmul.f32 %v859, %v1215
        %v1233 = vmul.f32 %v860, %v1215
        %v1234 = vmul.f32 %v861, %v1215
        %v1235 = vmul.f32 %v862, %v1215
        %v1236 = vmul.f32 %v863, %v1215
        %v1237 = vmul.f32 %v864, %v1215
        %v1238 = vmul.f32 %v865, %v1215
        %v1239 = vmul.f32 %v866, %v1215
        %v1240 = vmul.f32 %v867, %v1215
        %v1241 = vmul.f32 %v868, %v1215
        %v1242 = vmul.f32 %v869, %v1215
        %v1243 = vmul.f32 %v870, %v1215
        %v1244 = vmul.f32 %v871, %v1215
        %v1245 = vmul.f32 %v872, %v1215
        %v1246 = vmul.f32 %v873, %v1215
        %v1247 = vmul.f32 %v874, %v1215
        %v1248 = vmul.f32 %v875, %v1215
        %v1249 = vmul.f32 %v876, %v1215
        %v1250 = vmul.f32 %v877, %v1215
        %v1251 = vmul.f32 %v878, %v1215
        %v1252 = vmul.f32 %v879, %v1215
        %v1253 = vmul.f32 %v880, %v1215
        %v1254 = vmul.f32 %v881, %v1215
        %v1255 = vmul.f32 %v882, %v1215
        %v1256 = vmul.f32 %v883, %v1215
        %v1257 = vmul.f32 %v884, %v1215
        %v1258 = vmul.f32 %v885, %v1215
        %v1259 = vmul.f32 %v886, %v1215
        %v1260 = vmul.f32 %v887, %v1215
        %v1261 = vmul.f32 %v888, %v1215
        %v1262 = vmul.f32 %v889, %v1215
        %v1263 = vmul.f32 %v890, %v1215
        %vm1312 = vcmask 1045504
        %v1313 = vrot.slane %v1216, 2
        %v1314 = vrot.slane %v1217, 2
        %v1315 = vsel %vm1312, %v1313, %v1314
        %v1316 = vrot.slane %v1218, 2
        %v1317 = vsel %vm1312, %v1314, %v1316
        %v1318 = vrot.slane %v1219, 2
        %v1319 = vrot.slane %v1220, 2
        %v1320 = vsel %vm1312, %v1318, %v1319
        %v1321 = vrot.slane %v1221, 2
        %v1322 = vsel %vm1312, %v1319, %v1321
        %v1323 = vrot.slane %v1222, 2
        %v1324 = vrot.slane %v1223, 2
        %v1325 = vsel %vm1312, %v1323, %v1324
        %v1326 = vrot.slane %v1224, 2
        %v1327 = vsel %vm1312, %v1324, %v1326
        %v1328 = vrot.slane %v1225, 2
        %v1329 = vrot.slane %v1226, 2
        %v1330 = vsel %vm1312, %v1328, %v1329
        %v1331 = vrot.slane %v1227, 2
        %v1332 = vsel %vm1312, %v1329, %v1331
        %v1333 = vrot.slane %v1228, 2
        %v1334 = vrot.slane %v1229, 2
        %v1335 = vsel %vm1312, %v1333, %v1334
        %v1336 = vrot.slane %v1230, 2
        %v1337 = vsel %vm1312, %v1334, %v1336
        %v1338 = vrot.slane %v1231, 2
        %v1339 = vrot.slane %v1232, 2
        %v1340 = vsel %vm1312, %v1338, %v1339
        %v1341 = vrot.slane %v1233, 2
        %v1342 = vsel %vm1312, %v1339, %v1341
        %v1343 = vrot.slane %v1234, 2
        %v1344 = vrot.slane %v1235, 2
        %v1345 = vsel %vm1312, %v1343, %v1344
        %v1346 = vrot.slane %v1236, 2
        %v1347 = vsel %vm1312, %v1344, %v1346
        %v1348 = vrot.slane %v1237, 2
        %v1349 = vrot.slane %v1238, 2
        %v1350 = vsel %vm1312, %v1348, %v1349
        %v1351 = vrot.slane %v1239, 2
        %v1352 = vsel %vm1312, %v1349, %v1351
        %v1353 = vrot.slane %v1240, 2
        %v1354 = vrot.slane %v1241, 2
        %v1355 = vsel %vm1312, %v1353, %v1354
        %v1356 = vrot.slane %v1242, 2
        %v1357 = vsel %vm1312, %v1354, %v1356
        %v1358 = vrot.slane %v1243, 2
        %v1359 = vrot.slane %v1244, 2
        %v1360 = vsel %vm1312, %v1358, %v1359
        %v1361 = vrot.slane %v1245, 2
        %v1362 = vsel %vm1312, %v1359, %v1361
        %v1363 = vrot.slane %v1246, 2
        %v1364 = vrot.slane %v1247, 2
        %v1365 = vsel %vm1312, %v1363, %v1364
        %v1366 = vrot.slane %v1248, 2
        %v1367 = vsel %vm1312, %v1364, %v1366
        %v1368 = vrot.slane %v1249, 2
        %v1369 = vrot.slane %v1250, 2
        %v1370 = vsel %vm1312, %v1368, %v1369
        %v1371 = vrot.slane %v1251, 2
        %v1372 = vsel %vm1312, %v1369, %v1371
        %v1373 = vrot.slane %v1252, 2
        %v1374 = vrot.slane %v1253, 2
        %v1375 = vsel %vm1312, %v1373, %v1374
        %v1376 = vrot.slane %v1254, 2
        %v1377 = vsel %vm1312, %v1374, %v1376
        %v1378 = vrot.slane %v1255, 2
        %v1379 = vrot.slane %v1256, 2
        %v1380 = vsel %vm1312, %v1378, %v1379
        %v1381 = vrot.slane %v1257, 2
        %v1382 = vsel %vm1312, %v1379, %v1381
        %v1383 = vrot.slane %v1258, 2
        %v1384 = vrot.slane %v1259, 2
        %v1385 = vsel %vm1312, %v1383, %v1384
        %v1386 = vrot.slane %v1260, 2
        %v1387 = vsel %vm1312, %v1384, %v1386
        %v1388 = vrot.slane %v1261, 2
        %v1389 = vrot.slane %v1262, 2
        %v1390 = vsel %vm1312, %v1388, %v1389
        %v1391 = vrot.slane %v1263, 2
        %v1392 = vsel %vm1312, %v1389, %v1391
        %v1425 = vadd.f32 %v1180, %v1315
        %v1426 = vadd.f32 %v1181, %v1317
        %v1427 = vadd.f32 %v1182, %v1320
        %v1428 = vadd.f32 %v1183, %v1322
        %v1429 = vadd.f32 %v1184, %v1325
        %v1430 = vadd.f32 %v1185, %v1327
        %v1431 = vadd.f32 %v1186, %v1330
        %v1432 = vadd.f32 %v1187, %v1332
        %v1433 = vadd.f32 %v1188, %v1335
        %v1434 = vadd.f32 %v1189, %v1337
        %v1435 = vadd.f32 %v1190, %v1340
        %v1436 = vadd.f32 %v1191, %v1342
        %v1437 = vadd.f32 %v1192, %v1345
        %v1438 = vadd.f32 %v1193, %v1347
        %v1439 = vadd.f32 %v1194, %v1350
        %v1440 = vadd.f32 %v1195, %v1352
        %v1441 = vadd.f32 %v1196, %v1355
        %v1442 = vadd.f32 %v1197, %v1357
        %v1443 = vadd.f32 %v1198, %v1360
        %v1444 = vadd.f32 %v1199, %v1362
        %v1445 = vadd.f32 %v1200, %v1365
        %v1446 = vadd.f32 %v1201, %v1367
        %v1447 = vadd.f32 %v1202, %v1370
        %v1448 = vadd.f32 %v1203, %v1372
        %v1449 = vadd.f32 %v1204, %v1375
        %v1450 = vadd.f32 %v1205, %v1377
        %v1451 = vadd.f32 %v1206, %v1380
        %v1452 = vadd.f32 %v1207, %v1382
        %v1453 = vadd.f32 %v1208, %v1385
        %v1454 = vadd.f32 %v1209, %v1387
        %v1455 = vadd.f32 %v1210, %v1390
        %v1456 = vadd.f32 %v1211, %v1392
        %v1457 = vlaneseq
        %v1458 = vshrl.u32 %v1457, 7
        %v1459 = vsub.s32 3, %v1458
        %v1460 = vrot.slane %v897, %v1459
        %v1461 = vmul.f32 %v846, %v1460
        %v1462 = vmul.f32 %v847, %v1460
        %v1463 = vmul.f32 %v849, %v1460
        %v1464 = vmul.f32 %v850, %v1460
        %v1465 = vmul.f32 %v852, %v1460
        %v1466 = vmul.f32 %v853, %v1460
        %v1467 = vmul.f32 %v855, %v1460
        %v1468 = vmul.f32 %v856, %v1460
        %v1469 = vmul.f32 %v858, %v1460
        %v1470 = vmul.f32 %v859, %v1460
        %v1471 = vmul.f32 %v861, %v1460
        %v1472 = vmul.f32 %v862, %v1460
        %v1473 = vmul.f32 %v864, %v1460
        %v1474 = vmul.f32 %v865, %v1460
        %v1475 = vmul.f32 %v867, %v1460
        %v1476 = vmul.f32 %v868, %v1460
        %v1477 = vmul.f32 %v870, %v1460
        %v1478 = vmul.f32 %v871, %v1460
        %v1479 = vmul.f32 %v873, %v1460
        %v1480 = vmul.f32 %v874, %v1460
        %v1481 = vmul.f32 %v876, %v1460
        %v1482 = vmul.f32 %v877, %v1460
        %v1483 = vmul.f32 %v879, %v1460
        %v1484 = vmul.f32 %v880, %v1460
        %v1485 = vmul.f32 %v882, %v1460
        %v1486 = vmul.f32 %v883, %v1460
        %v1487 = vmul.f32 %v885, %v1460
        %v1488 = vmul.f32 %v886, %v1460
        %v1489 = vmul.f32 %v888, %v1460
        %v1490 = vmul.f32 %v889, %v1460
        %v1491 = vmul.f32 %v891, %v1460
        %v1492 = vmul.f32 %v892, %v1460
        %v1493 = vadd.f32 %v1425, %v1461
        %v1494 = vadd.f32 %v1426, %v1462
        %v1495 = vadd.f32 %v1427, %v1463
        %v1496 = vadd.f32 %v1428, %v1464
        %v1497 = vadd.f32 %v1429, %v1465
        %v1498 = vadd.f32 %v1430, %v1466
        %v1499 = vadd.f32 %v1431, %v1467
        %v1500 = vadd.f32 %v1432, %v1468
        %v1501 = vadd.f32 %v1433, %v1469
        %v1502 = vadd.f32 %v1434, %v1470
        %v1503 = vadd.f32 %v1435, %v1471
        %v1504 = vadd.f32 %v1436, %v1472
        %v1505 = vadd.f32 %v1437, %v1473
        %v1506 = vadd.f32 %v1438, %v1474
        %v1507 = vadd.f32 %v1439, %v1475
        %v1508 = vadd.f32 %v1440, %v1476
        %v1509 = vadd.f32 %v1441, %v1477
        %v1510 = vadd.f32 %v1442, %v1478
        %v1511 = vadd.f32 %v1443, %v1479
        %v1512 = vadd.f32 %v1444, %v1480
        %v1513 = vadd.f32 %v1445, %v1481
        %v1514 = vadd.f32 %v1446, %v1482
        %v1515 = vadd.f32 %v1447, %v1483
        %v1516 = vadd.f32 %v1448, %v1484
        %v1517 = vadd.f32 %v1449, %v1485
        %v1518 = vadd.f32 %v1450, %v1486
        %v1519 = vadd.f32 %v1451, %v1487
        %v1520 = vadd.f32 %v1452, %v1488
        %v1521 = vadd.f32 %v1453, %v1489
        %v1522 = vadd.f32 %v1454, %v1490
        %v1523 = vadd.f32 %v1455, %v1491
        %v1524 = vadd.f32 %v1456, %v1492
        %v1525 = vlaneseq
        %v1526 = vshrl.u32 %v1525, 7
        %v1527 = vsub.s32 4, %v1526
        %v1528 = vrot.slane %v897, %v1527
        %v1529 = vmul.f32 %v846, %v1528
        %v1530 = vmul.f32 %v847, %v1528
        %v1531 = vmul.f32 %v848, %v1528
        %v1532 = vmul.f32 %v849, %v1528
        %v1533 = vmul.f32 %v850, %v1528
        %v1534 = vmul.f32 %v851, %v1528
        %v1535 = vmul.f32 %v852, %v1528
        %v1536 = vmul.f32 %v853, %v1528
        %v1537 = vmul.f32 %v854, %v1528
        %v1538 = vmul.f32 %v855, %v1528
        %v1539 = vmul.f32 %v856, %v1528
        %v1540 = vmul.f32 %v857, %v1528
        %v1541 = vmul.f32 %v858, %v1528
        %v1542 = vmul.f32 %v859, %v1528
        %v1543 = vmul.f32 %v860, %v1528
        %v1544 = vmul.f32 %v861, %v1528
        %v1545 = vmul.f32 %v862, %v1528
        %v1546 = vmul.f32 %v863, %v1528
        %v1547 = vmul.f32 %v864, %v1528
        %v1548 = vmul.f32 %v865, %v1528
        %v1549 = vmul.f32 %v866, %v1528
        %v1550 = vmul.f32 %v867, %v1528
        %v1551 = vmul.f32 %v868, %v1528
        %v1552 = vmul.f32 %v869, %v1528
        %v1553 = vmul.f32 %v870, %v1528
        %v1554 = vmul.f32 %v871, %v1528
        %v1555 = vmul.f32 %v872, %v1528
        %v1556 = vmul.f32 %v873, %v1528
        %v1557 = vmul.f32 %v874, %v1528
        %v1558 = vmul.f32 %v875, %v1528
        %v1559 = vmul.f32 %v876, %v1528
        %v1560 = vmul.f32 %v877, %v1528
        %v1561 = vmul.f32 %v878, %v1528
        %v1562 = vmul.f32 %v879, %v1528
        %v1563 = vmul.f32 %v880, %v1528
        %v1564 = vmul.f32 %v881, %v1528
        %v1565 = vmul.f32 %v882, %v1528
        %v1566 = vmul.f32 %v883, %v1528
        %v1567 = vmul.f32 %v884, %v1528
        %v1568 = vmul.f32 %v885, %v1528
        %v1569 = vmul.f32 %v886, %v1528
        %v1570 = vmul.f32 %v887, %v1528
        %v1571 = vmul.f32 %v888, %v1528
        %v1572 = vmul.f32 %v889, %v1528
        %v1573 = vmul.f32 %v890, %v1528
        %v1574 = vmul.f32 %v891, %v1528
        %v1575 = vmul.f32 %v892, %v1528
        %v1576 = vmul.f32 %v893, %v1528
        %v1625 = vrot.slane %v1529, 1
        %v1626 = vrot.slane %v1530, 1
        %v1627 = vsel %vm1067, %v1625, %v1626
        %v1628 = vrot.slane %v1531, 1
        %v1629 = vsel %vm1067, %v1626, %v1628
        %v1630 = vrot.slane %v1532, 1
        %v1631 = vrot.slane %v1533, 1
        %v1632 = vsel %vm1067, %v1630, %v1631
        %v1633 = vrot.slane %v1534, 1
        %v1634 = vsel %vm1067, %v1631, %v1633
        %v1635 = vrot.slane %v1535, 1
        %v1636 = vrot.slane %v1536, 1
        %v1637 = vsel %vm1067, %v1635, %v1636
        %v1638 = vrot.slane %v1537, 1
        %v1639 = vsel %vm1067, %v1636, %v1638
        %v1640 = vrot.slane %v1538, 1
        %v1641 = vrot.slane %v1539, 1
        %v1642 = vsel %vm1067, %v1640, %v1641
        %v1643 = vrot.slane %v1540, 1
        %v1644 = vsel %vm1067, %v1641, %v1643
        %v1645 = vrot.slane %v1541, 1
        %v1646 = vrot.slane %v1542, 1
        %v1647 = vsel %vm1067, %v1645, %v1646
        %v1648 = vrot.slane %v1543, 1
        %v1649 = vsel %vm1067, %v1646, %v1648
        %v1650 = vrot.slane %v1544, 1
        %v1651 = vrot.slane %v1545, 1
        %v1652 = vsel %vm1067, %v1650, %v1651
        %v1653 = vrot.slane %v1546, 1
        %v1654 = vsel %vm1067, %v1651, %v1653
        %v1655 = vrot.slane %v1547, 1
        %v1656 = vrot.slane %v1548, 1
        %v1657 = vsel %vm1067, %v1655, %v1656
        %v1658 = vrot.slane %v1549, 1
        %v1659 = vsel %vm1067, %v1656, %v1658
        %v1660 = vrot.slane %v1550, 1
        %v1661 = vrot.slane %v1551, 1
        %v1662 = vsel %vm1067, %v1660, %v1661
        %v1663 = vrot.slane %v1552, 1
        %v1664 = vsel %vm1067, %v1661, %v1663
        %v1665 = vrot.slane %v1553, 1
        %v1666 = vrot.slane %v1554, 1
        %v1667 = vsel %vm1067, %v1665, %v1666
        %v1668 = vrot.slane %v1555, 1
        %v1669 = vsel %vm1067, %v1666, %v1668
        %v1670 = vrot.slane %v1556, 1
        %v1671 = vrot.slane %v1557, 1
        %v1672 = vsel %vm1067, %v1670, %v1671
        %v1673 = vrot.slane %v1558, 1
        %v1674 = vsel %vm1067, %v1671, %v1673
        %v1675 = vrot.slane %v1559, 1
        %v1676 = vrot.slane %v1560, 1
        %v1677 = vsel %vm1067, %v1675, %v1676
        %v1678 = vrot.slane %v1561, 1
        %v1679 = vsel %vm1067, %v1676, %v1678
        %v1680 = vrot.slane %v1562, 1
        %v1681 = vrot.slane %v1563, 1
        %v1682 = vsel %vm1067, %v1680, %v1681
        %v1683 = vrot.slane %v1564, 1
        %v1684 = vsel %vm1067, %v1681, %v1683
        %v1685 = vrot.slane %v1565, 1
        %v1686 = vrot.slane %v1566, 1
        %v1687 = vsel %vm1067, %v1685, %v1686
        %v1688 = vrot.slane %v1567, 1
        %v1689 = vsel %vm1067, %v1686, %v1688
        %v1690 = vrot.slane %v1568, 1
        %v1691 = vrot.slane %v1569, 1
        %v1692 = vsel %vm1067, %v1690, %v1691
        %v1693 = vrot.slane %v1570, 1
        %v1694 = vsel %vm1067, %v1691, %v1693
        %v1695 = vrot.slane %v1571, 1
        %v1696 = vrot.slane %v1572, 1
        %v1697 = vsel %vm1067, %v1695, %v1696
        %v1698 = vrot.slane %v1573, 1
        %v1699 = vsel %vm1067, %v1696, %v1698
        %v1700 = vrot.slane %v1574, 1
        %v1701 = vrot.slane %v1575, 1
        %v1702 = vsel %vm1067, %v1700, %v1701
        %v1703 = vrot.slane %v1576, 1
        %v1704 = vsel %vm1067, %v1701, %v1703
        %v1737 = vadd.f32 %v1493, %v1627
        %v1738 = vadd.f32 %v1494, %v1629
        %v1739 = vadd.f32 %v1495, %v1632
        %v1740 = vadd.f32 %v1496, %v1634
        %v1741 = vadd.f32 %v1497, %v1637
        %v1742 = vadd.f32 %v1498, %v1639
        %v1743 = vadd.f32 %v1499, %v1642
        %v1744 = vadd.f32 %v1500, %v1644
        %v1745 = vadd.f32 %v1501, %v1647
        %v1746 = vadd.f32 %v1502, %v1649
        %v1747 = vadd.f32 %v1503, %v1652
        %v1748 = vadd.f32 %v1504, %v1654
        %v1749 = vadd.f32 %v1505, %v1657
        %v1750 = vadd.f32 %v1506, %v1659
        %v1751 = vadd.f32 %v1507, %v1662
        %v1752 = vadd.f32 %v1508, %v1664
        %v1753 = vadd.f32 %v1509, %v1667
        %v1754 = vadd.f32 %v1510, %v1669
        %v1755 = vadd.f32 %v1511, %v1672
        %v1756 = vadd.f32 %v1512, %v1674
        %v1757 = vadd.f32 %v1513, %v1677
        %v1758 = vadd.f32 %v1514, %v1679
        %v1759 = vadd.f32 %v1515, %v1682
        %v1760 = vadd.f32 %v1516, %v1684
        %v1761 = vadd.f32 %v1517, %v1687
        %v1762 = vadd.f32 %v1518, %v1689
        %v1763 = vadd.f32 %v1519, %v1692
        %v1764 = vadd.f32 %v1520, %v1694
        %v1765 = vadd.f32 %v1521, %v1697
        %v1766 = vadd.f32 %v1522, %v1699
        %v1767 = vadd.f32 %v1523, %v1702
        %v1768 = vadd.f32 %v1524, %v1704
        %v1769 = vlaneseq
        %v1770 = vshrl.u32 %v1769, 7
        %v1771 = vsub.s32 5, %v1770
        %v1772 = vrot.slane %v897, %v1771
        %v1773 = vmul.f32 %v846, %v1772
        %v1774 = vmul.f32 %v847, %v1772
        %v1775 = vmul.f32 %v848, %v1772
        %v1776 = vmul.f32 %v849, %v1772
        %v1777 = vmul.f32 %v850, %v1772
        %v1778 = vmul.f32 %v851, %v1772
        %v1779 = vmul.f32 %v852, %v1772
        %v1780 = vmul.f32 %v853, %v1772
        %v1781 = vmul.f32 %v854, %v1772
        %v1782 = vmul.f32 %v855, %v1772
        %v1783 = vmul.f32 %v856, %v1772
        %v1784 = vmul.f32 %v857, %v1772
        %v1785 = vmul.f32 %v858, %v1772
        %v1786 = vmul.f32 %v859, %v1772
        %v1787 = vmul.f32 %v860, %v1772
        %v1788 = vmul.f32 %v861, %v1772
        %v1789 = vmul.f32 %v862, %v1772
        %v1790 = vmul.f32 %v863, %v1772
        %v1791 = vmul.f32 %v864, %v1772
        %v1792 = vmul.f32 %v865, %v1772
        %v1793 = vmul.f32 %v866, %v1772
        %v1794 = vmul.f32 %v867, %v1772
        %v1795 = vmul.f32 %v868, %v1772
        %v1796 = vmul.f32 %v869, %v1772
        %v1797 = vmul.f32 %v870, %v1772
        %v1798 = vmul.f32 %v871, %v1772
        %v1799 = vmul.f32 %v872, %v1772
        %v1800 = vmul.f32 %v873, %v1772
        %v1801 = vmul.f32 %v874, %v1772
        %v1802 = vmul.f32 %v875, %v1772
        %v1803 = vmul.f32 %v876, %v1772
        %v1804 = vmul.f32 %v877, %v1772
        %v1805 = vmul.f32 %v878, %v1772
        %v1806 = vmul.f32 %v879, %v1772
        %v1807 = vmul.f32 %v880, %v1772
        %v1808 = vmul.f32 %v881, %v1772
        %v1809 = vmul.f32 %v882, %v1772
        %v1810 = vmul.f32 %v883, %v1772
        %v1811 = vmul.f32 %v884, %v1772
        %v1812 = vmul.f32 %v885, %v1772
        %v1813 = vmul.f32 %v886, %v1772
        %v1814 = vmul.f32 %v887, %v1772
        %v1815 = vmul.f32 %v888, %v1772
        %v1816 = vmul.f32 %v889, %v1772
        %v1817 = vmul.f32 %v890, %v1772
        %v1818 = vmul.f32 %v891, %v1772
        %v1819 = vmul.f32 %v892, %v1772
        %v1820 = vmul.f32 %v893, %v1772
        %v1869 = vrot.slane %v1773, 2
        %v1870 = vrot.slane %v1774, 2
        %v1871 = vsel %vm1312, %v1869, %v1870
        %v1872 = vrot.slane %v1775, 2
        %v1873 = vsel %vm1312, %v1870, %v1872
        %v1874 = vrot.slane %v1776, 2
        %v1875 = vrot.slane %v1777, 2
        %v1876 = vsel %vm1312, %v1874, %v1875
        %v1877 = vrot.slane %v1778, 2
        %v1878 = vsel %vm1312, %v1875, %v1877
        %v1879 = vrot.slane %v1779, 2
        %v1880 = vrot.slane %v1780, 2
        %v1881 = vsel %vm1312, %v1879, %v1880
        %v1882 = vrot.slane %v1781, 2
        %v1883 = vsel %vm1312, %v1880, %v1882
        %v1884 = vrot.slane %v1782, 2
        %v1885 = vrot.slane %v1783, 2
        %v1886 = vsel %vm1312, %v1884, %v1885
        %v1887 = vrot.slane %v1784, 2
        %v1888 = vsel %vm1312, %v1885, %v1887
        %v1889 = vrot.slane %v1785, 2
        %v1890 = vrot.slane %v1786, 2
        %v1891 = vsel %vm1312, %v1889, %v1890
        %v1892 = vrot.slane %v1787, 2
        %v1893 = vsel %vm1312, %v1890, %v1892
        %v1894 = vrot.slane %v1788, 2
        %v1895 = vrot.slane %v1789, 2
        %v1896 = vsel %vm1312, %v1894, %v1895
        %v1897 = vrot.slane %v1790, 2
        %v1898 = vsel %vm1312, %v1895, %v1897
        %v1899 = vrot.slane %v1791, 2
        %v1900 = vrot.slane %v1792, 2
        %v1901 = vsel %vm1312, %v1899, %v1900
        %v1902 = vrot.slane %v1793, 2
        %v1903 = vsel %vm1312, %v1900, %v1902
        %v1904 = vrot.slane %v1794, 2
        %v1905 = vrot.slane %v1795, 2
        %v1906 = vsel %vm1312, %v1904, %v1905
        %v1907 = vrot.slane %v1796, 2
        %v1908 = vsel %vm1312, %v1905, %v1907
        %v1909 = vrot.slane %v1797, 2
        %v1910 = vrot.slane %v1798, 2
        %v1911 = vsel %vm1312, %v1909, %v1910
        %v1912 = vrot.slane %v1799, 2
        %v1913 = vsel %vm1312, %v1910, %v1912
        %v1914 = vrot.slane %v1800, 2
        %v1915 = vrot.slane %v1801, 2
        %v1916 = vsel %vm1312, %v1914, %v1915
        %v1917 = vrot.slane %v1802, 2
        %v1918 = vsel %vm1312, %v1915, %v1917
        %v1919 = vrot.slane %v1803, 2
        %v1920 = vrot.slane %v1804, 2
        %v1921 = vsel %vm1312, %v1919, %v1920
        %v1922 = vrot.slane %v1805, 2
        %v1923 = vsel %vm1312, %v1920, %v1922
        %v1924 = vrot.slane %v1806, 2
        %v1925 = vrot.slane %v1807, 2
        %v1926 = vsel %vm1312, %v1924, %v1925
        %v1927 = vrot.slane %v1808, 2
        %v1928 = vsel %vm1312, %v1925, %v1927
        %v1929 = vrot.slane %v1809, 2
        %v1930 = vrot.slane %v1810, 2
        %v1931 = vsel %vm1312, %v1929, %v1930
        %v1932 = vrot.slane %v1811, 2
        %v1933 = vsel %vm1312, %v1930, %v1932
        %v1934 = vrot.slane %v1812, 2
        %v1935 = vrot.slane %v1813, 2
        %v1936 = vsel %vm1312, %v1934, %v1935
        %v1937 = vrot.slane %v1814, 2
        %v1938 = vsel %vm1312, %v1935, %v1937
        %v1939 = vrot.slane %v1815, 2
        %v1940 = vrot.slane %v1816, 2
        %v1941 = vsel %vm1312, %v1939, %v1940
        %v1942 = vrot.slane %v1817, 2
        %v1943 = vsel %vm1312, %v1940, %v1942
        %v1944 = vrot.slane %v1818, 2
        %v1945 = vrot.slane %v1819, 2
        %v1946 = vsel %vm1312, %v1944, %v1945
        %v1947 = vrot.slane %v1820, 2
        %v1948 = vsel %vm1312, %v1945, %v1947
        %v1981 = vadd.f32 %v1737, %v1871
        %v1982 = vadd.f32 %v1738, %v1873
        %v1983 = vadd.f32 %v1739, %v1876
        %v1984 = vadd.f32 %v1740, %v1878
        %v1985 = vadd.f32 %v1741, %v1881
        %v1986 = vadd.f32 %v1742, %v1883
        %v1987 = vadd.f32 %v1743, %v1886
        %v1988 = vadd.f32 %v1744, %v1888
        %v1989 = vadd.f32 %v1745, %v1891
        %v1990 = vadd.f32 %v1746, %v1893
        %v1991 = vadd.f32 %v1747, %v1896
        %v1992 = vadd.f32 %v1748, %v1898
        %v1993 = vadd.f32 %v1749, %v1901
        %v1994 = vadd.f32 %v1750, %v1903
        %v1995 = vadd.f32 %v1751, %v1906
        %v1996 = vadd.f32 %v1752, %v1908
        %v1997 = vadd.f32 %v1753, %v1911
        %v1998 = vadd.f32 %v1754, %v1913
        %v1999 = vadd.f32 %v1755, %v1916
        %v2000 = vadd.f32 %v1756, %v1918
        %v2001 = vadd.f32 %v1757, %v1921
        %v2002 = vadd.f32 %v1758, %v1923
        %v2003 = vadd.f32 %v1759, %v1926
        %v2004 = vadd.f32 %v1760, %v1928
        %v2005 = vadd.f32 %v1761, %v1931
        %v2006 = vadd.f32 %v1762, %v1933
        %v2007 = vadd.f32 %v1763, %v1936
        %v2008 = vadd.f32 %v1764, %v1938
        %v2009 = vadd.f32 %v1765, %v1941
        %v2010 = vadd.f32 %v1766, %v1943
        %v2011 = vadd.f32 %v1767, %v1946
        %v2012 = vadd.f32 %v1768, %v1948
        %v2013 = vlaneseq
        %v2014 = vshrl.u32 %v2013, 7
        %v2015 = vsub.s32 6, %v2014
        %v2016 = vrot.slane %v897, %v2015
        %v2017 = vmul.f32 %v849, %v2016
        %v2018 = vmul.f32 %v850, %v2016
        %v2019 = vmul.f32 %v852, %v2016
        %v2020 = vmul.f32 %v853, %v2016
        %v2021 = vmul.f32 %v855, %v2016
        %v2022 = vmul.f32 %v856, %v2016
        %v2023 = vmul.f32 %v858, %v2016
        %v2024 = vmul.f32 %v859, %v2016
        %v2025 = vmul.f32 %v861, %v2016
        %v2026 = vmul.f32 %v862, %v2016
        %v2027 = vmul.f32 %v864, %v2016
        %v2028 = vmul.f32 %v865, %v2016
        %v2029 = vmul.f32 %v867, %v2016
        %v2030 = vmul.f32 %v868, %v2016
        %v2031 = vmul.f32 %v870, %v2016
        %v2032 = vmul.f32 %v871, %v2016
        %v2033 = vmul.f32 %v873, %v2016
        %v2034 = vmul.f32 %v874, %v2016
        %v2035 = vmul.f32 %v876, %v2016
        %v2036 = vmul.f32 %v877, %v2016
        %v2037 = vmul.f32 %v879, %v2016
        %v2038 = vmul.f32 %v880, %v2016
        %v2039 = vmul.f32 %v882, %v2016
        %v2040 = vmul.f32 %v883, %v2016
        %v2041 = vmul.f32 %v885, %v2016
        %v2042 = vmul.f32 %v886, %v2016
        %v2043 = vmul.f32 %v888, %v2016
        %v2044 = vmul.f32 %v889, %v2016
        %v2045 = vmul.f32 %v891, %v2016
        %v2046 = vmul.f32 %v892, %v2016
        %v2047 = vmul.f32 %v894, %v2016
        %v2048 = vmul.f32 %v895, %v2016
        %v2049 = vadd.f32 %v1981, %v2017
        %v2050 = vadd.f32 %v1982, %v2018
        %v2051 = vadd.f32 %v1983, %v2019
        %v2052 = vadd.f32 %v1984, %v2020
        %v2053 = vadd.f32 %v1985, %v2021
        %v2054 = vadd.f32 %v1986, %v2022
        %v2055 = vadd.f32 %v1987, %v2023
        %v2056 = vadd.f32 %v1988, %v2024
        %v2057 = vadd.f32 %v1989, %v2025
        %v2058 = vadd.f32 %v1990, %v2026
        %v2059 = vadd.f32 %v1991, %v2027
        %v2060 = vadd.f32 %v1992, %v2028
        %v2061 = vadd.f32 %v1993, %v2029
        %v2062 = vadd.f32 %v1994, %v2030
        %v2063 = vadd.f32 %v1995, %v2031
        %v2064 = vadd.f32 %v1996, %v2032
        %v2065 = vadd.f32 %v1997, %v2033
        %v2066 = vadd.f32 %v1998, %v2034
        %v2067 = vadd.f32 %v1999, %v2035
        %v2068 = vadd.f32 %v2000, %v2036
        %v2069 = vadd.f32 %v2001, %v2037
        %v2070 = vadd.f32 %v2002, %v2038
        %v2071 = vadd.f32 %v2003, %v2039
        %v2072 = vadd.f32 %v2004, %v2040
        %v2073 = vadd.f32 %v2005, %v2041
        %v2074 = vadd.f32 %v2006, %v2042
        %v2075 = vadd.f32 %v2007, %v2043
        %v2076 = vadd.f32 %v2008, %v2044
        %v2077 = vadd.f32 %v2009, %v2045
        %v2078 = vadd.f32 %v2010, %v2046
        %v2079 = vadd.f32 %v2011, %v2047
        %v2080 = vadd.f32 %v2012, %v2048
        %v2081 = vlaneseq
        %v2082 = vshrl.u32 %v2081, 7
        %v2083 = vsub.s32 7, %v2082
        %v2084 = vrot.slane %v897, %v2083
        %v2085 = vmul.f32 %v849, %v2084
        %v2086 = vmul.f32 %v850, %v2084
        %v2087 = vmul.f32 %v851, %v2084
        %v2088 = vmul.f32 %v852, %v2084
        %v2089 = vmul.f32 %v853, %v2084
        %v2090 = vmul.f32 %v854, %v2084
        %v2091 = vmul.f32 %v855, %v2084
        %v2092 = vmul.f32 %v856, %v2084
        %v2093 = vmul.f32 %v857, %v2084
        %v2094 = vmul.f32 %v858, %v2084
        %v2095 = vmul.f32 %v859, %v2084
        %v2096 = vmul.f32 %v860, %v2084
        %v2097 = vmul.f32 %v861, %v2084
        %v2098 = vmul.f32 %v862, %v2084
        %v2099 = vmul.f32 %v863, %v2084
        %v2100 = vmul.f32 %v864, %v2084
        %v2101 = vmul.f32 %v865, %v2084
        %v2102 = vmul.f32 %v866, %v2084
        %v2103 = vmul.f32 %v867, %v2084
        %v2104 = vmul.f32 %v868, %v2084
        %v2105 = vmul.f32 %v869, %v2084
        %v2106 = vmul.f32 %v870, %v2084
        %v2107 = vmul.f32 %v871, %v2084
        %v2108 = vmul.f32 %v872, %v2084
        %v2109 = vmul.f32 %v873, %v2084
        %v2110 = vmul.f32 %v874, %v2084
        %v2111 = vmul.f32 %v875, %v2084
        %v2112 = vmul.f32 %v876, %v2084
        %v2113 = vmul.f32 %v877, %v2084
        %v2114 = vmul.f32 %v878, %v2084
        %v2115 = vmul.f32 %v879, %v2084
        %v2116 = vmul.f32 %v880, %v2084
        %v2117 = vmul.f32 %v881, %v2084
        %v2118 = vmul.f32 %v882, %v2084
        %v2119 = vmul.f32 %v883, %v2084
        %v2120 = vmul.f32 %v884, %v2084
        %v2121 = vmul.f32 %v885, %v2084
        %v2122 = vmul.f32 %v886, %v2084
        %v2123 = vmul.f32 %v887, %v2084
        %v2124 = vmul.f32 %v888, %v2084
        %v2125 = vmul.f32 %v889, %v2084
        %v2126 = vmul.f32 %v890, %v2084
        %v2127 = vmul.f32 %v891, %v2084
        %v2128 = vmul.f32 %v892, %v2084
        %v2129 = vmul.f32 %v893, %v2084
        %v2130 = vmul.f32 %v894, %v2084
        %v2131 = vmul.f32 %v895, %v2084
        %v2132 = vmul.f32 %v896, %v2084
        %v2181 = vrot.slane %v2085, 1
        %v2182 = vrot.slane %v2086, 1
        %v2183 = vsel %vm1067, %v2181, %v2182
        %v2184 = vrot.slane %v2087, 1
        %v2185 = vsel %vm1067, %v2182, %v2184
        %v2186 = vrot.slane %v2088, 1
        %v2187 = vrot.slane %v2089, 1
        %v2188 = vsel %vm1067, %v2186, %v2187
        %v2189 = vrot.slane %v2090, 1
        %v2190 = vsel %vm1067, %v2187, %v2189
        %v2191 = vrot.slane %v2091, 1
        %v2192 = vrot.slane %v2092, 1
        %v2193 = vsel %vm1067, %v2191, %v2192
        %v2194 = vrot.slane %v2093, 1
        %v2195 = vsel %vm1067, %v2192, %v2194
        %v2196 = vrot.slane %v2094, 1
        %v2197 = vrot.slane %v2095, 1
        %v2198 = vsel %vm1067, %v2196, %v2197
        %v2199 = vrot.slane %v2096, 1
        %v2200 = vsel %vm1067, %v2197, %v2199
        %v2201 = vrot.slane %v2097, 1
        %v2202 = vrot.slane %v2098, 1
        %v2203 = vsel %vm1067, %v2201, %v2202
        %v2204 = vrot.slane %v2099, 1
        %v2205 = vsel %vm1067, %v2202, %v2204
        %v2206 = vrot.slane %v2100, 1
        %v2207 = vrot.slane %v2101, 1
        %v2208 = vsel %vm1067, %v2206, %v2207
        %v2209 = vrot.slane %v2102, 1
        %v2210 = vsel %vm1067, %v2207, %v2209
        %v2211 = vrot.slane %v2103, 1
        %v2212 = vrot.slane %v2104, 1
        %v2213 = vsel %vm1067, %v2211, %v2212
        %v2214 = vrot.slane %v2105, 1
        %v2215 = vsel %vm1067, %v2212, %v2214
        %v2216 = vrot.slane %v2106, 1
        %v2217 = vrot.slane %v2107, 1
        %v2218 = vsel %vm1067, %v2216, %v2217
        %v2219 = vrot.slane %v2108, 1
        %v2220 = vsel %vm1067, %v2217, %v2219
        %v2221 = vrot.slane %v2109, 1
        %v2222 = vrot.slane %v2110, 1
        %v2223 = vsel %vm1067, %v2221, %v2222
        %v2224 = vrot.slane %v2111, 1
        %v2225 = vsel %vm1067, %v2222, %v2224
        %v2226 = vrot.slane %v2112, 1
        %v2227 = vrot.slane %v2113, 1
        %v2228 = vsel %vm1067, %v2226, %v2227
        %v2229 = vrot.slane %v2114, 1
        %v2230 = vsel %vm1067, %v2227, %v2229
        %v2231 = vrot.slane %v2115, 1
        %v2232 = vrot.slane %v2116, 1
        %v2233 = vsel %vm1067, %v2231, %v2232
        %v2234 = vrot.slane %v2117, 1
        %v2235 = vsel %vm1067, %v2232, %v2234
        %v2236 = vrot.slane %v2118, 1
        %v2237 = vrot.slane %v2119, 1
        %v2238 = vsel %vm1067, %v2236, %v2237
        %v2239 = vrot.slane %v2120, 1
        %v2240 = vsel %vm1067, %v2237, %v2239
        %v2241 = vrot.slane %v2121, 1
        %v2242 = vrot.slane %v2122, 1
        %v2243 = vsel %vm1067, %v2241, %v2242
        %v2244 = vrot.slane %v2123, 1
        %v2245 = vsel %vm1067, %v2242, %v2244
        %v2246 = vrot.slane %v2124, 1
        %v2247 = vrot.slane %v2125, 1
        %v2248 = vsel %vm1067, %v2246, %v2247
        %v2249 = vrot.slane %v2126, 1
        %v2250 = vsel %vm1067, %v2247, %v2249
        %v2251 = vrot.slane %v2127, 1
        %v2252 = vrot.slane %v2128, 1
        %v2253 = vsel %vm1067, %v2251, %v2252
        %v2254 = vrot.slane %v2129, 1
        %v2255 = vsel %vm1067, %v2252, %v2254
        %v2256 = vrot.slane %v2130, 1
        %v2257 = vrot.slane %v2131, 1
        %v2258 = vsel %vm1067, %v2256, %v2257
        %v2259 = vrot.slane %v2132, 1
        %v2260 = vsel %vm1067, %v2257, %v2259
        %v2293 = vadd.f32 %v2049, %v2183
        %v2294 = vadd.f32 %v2050, %v2185
        %v2295 = vadd.f32 %v2051, %v2188
        %v2296 = vadd.f32 %v2052, %v2190
        %v2297 = vadd.f32 %v2053, %v2193
        %v2298 = vadd.f32 %v2054, %v2195
        %v2299 = vadd.f32 %v2055, %v2198
        %v2300 = vadd.f32 %v2056, %v2200
        %v2301 = vadd.f32 %v2057, %v2203
        %v2302 = vadd.f32 %v2058, %v2205
        %v2303 = vadd.f32 %v2059, %v2208
        %v2304 = vadd.f32 %v2060, %v2210
        %v2305 = vadd.f32 %v2061, %v2213
        %v2306 = vadd.f32 %v2062, %v2215
        %v2307 = vadd.f32 %v2063, %v2218
        %v2308 = vadd.f32 %v2064, %v2220
        %v2309 = vadd.f32 %v2065, %v2223
        %v2310 = vadd.f32 %v2066, %v2225
        %v2311 = vadd.f32 %v2067, %v2228
        %v2312 = vadd.f32 %v2068, %v2230
        %v2313 = vadd.f32 %v2069, %v2233
        %v2314 = vadd.f32 %v2070, %v2235
        %v2315 = vadd.f32 %v2071, %v2238
        %v2316 = vadd.f32 %v2072, %v2240
        %v2317 = vadd.f32 %v2073, %v2243
        %v2318 = vadd.f32 %v2074, %v2245
        %v2319 = vadd.f32 %v2075, %v2248
        %v2320 = vadd.f32 %v2076, %v2250
        %v2321 = vadd.f32 %v2077, %v2253
        %v2322 = vadd.f32 %v2078, %v2255
        %v2323 = vadd.f32 %v2079, %v2258
        %v2324 = vadd.f32 %v2080, %v2260
        %v2325 = vlaneseq
        %v2326 = vshrl.u32 %v2325, 7
        %v2327 = vsub.s32 0, %v2326
        %v2328 = vrot.slane %v898, %v2327
        %v2329 = vmul.f32 %v849, %v2328
        %v2330 = vmul.f32 %v850, %v2328
        %v2331 = vmul.f32 %v851, %v2328
        %v2332 = vmul.f32 %v852, %v2328
        %v2333 = vmul.f32 %v853, %v2328
        %v2334 = vmul.f32 %v854, %v2328
        %v2335 = vmul.f32 %v855, %v2328
        %v2336 = vmul.f32 %v856, %v2328
        %v2337 = vmul.f32 %v857, %v2328
        %v2338 = vmul.f32 %v858, %v2328
        %v2339 = vmul.f32 %v859, %v2328
        %v2340 = vmul.f32 %v860, %v2328
        %v2341 = vmul.f32 %v861, %v2328
        %v2342 = vmul.f32 %v862, %v2328
        %v2343 = vmul.f32 %v863, %v2328
        %v2344 = vmul.f32 %v864, %v2328
        %v2345 = vmul.f32 %v865, %v2328
        %v2346 = vmul.f32 %v866, %v2328
        %v2347 = vmul.f32 %v867, %v2328
        %v2348 = vmul.f32 %v868, %v2328
        %v2349 = vmul.f32 %v869, %v2328
        %v2350 = vmul.f32 %v870, %v2328
        %v2351 = vmul.f32 %v871, %v2328
        %v2352 = vmul.f32 %v872, %v2328
        %v2353 = vmul.f32 %v873, %v2328
        %v2354 = vmul.f32 %v874, %v2328
        %v2355 = vmul.f32 %v875, %v2328
        %v2356 = vmul.f32 %v876, %v2328
        %v2357 = vmul.f32 %v877, %v2328
        %v2358 = vmul.f32 %v878, %v2328
        %v2359 = vmul.f32 %v879, %v2328
        %v2360 = vmul.f32 %v880, %v2328
        %v2361 = vmul.f32 %v881, %v2328
        %v2362 = vmul.f32 %v882, %v2328
        %v2363 = vmul.f32 %v883, %v2328
        %v2364 = vmul.f32 %v884, %v2328
        %v2365 = vmul.f32 %v885, %v2328
        %v2366 = vmul.f32 %v886, %v2328
        %v2367 = vmul.f32 %v887, %v2328
        %v2368 = vmul.f32 %v888, %v2328
        %v2369 = vmul.f32 %v889, %v2328
        %v2370 = vmul.f32 %v890, %v2328
        %v2371 = vmul.f32 %v891, %v2328
        %v2372 = vmul.f32 %v892, %v2328
        %v2373 = vmul.f32 %v893, %v2328
        %v2374 = vmul.f32 %v894, %v2328
        %v2375 = vmul.f32 %v895, %v2328
        %v2376 = vmul.f32 %v896, %v2328
        %v2425 = vrot.slane %v2329, 2
        %v2426 = vrot.slane %v2330, 2
        %v2427 = vsel %vm1312, %v2425, %v2426
        %v2428 = vrot.slane %v2331, 2
        %v2429 = vsel %vm1312, %v2426, %v2428
        %v2430 = vrot.slane %v2332, 2
        %v2431 = vrot.slane %v2333, 2
        %v2432 = vsel %vm1312, %v2430, %v2431
        %v2433 = vrot.slane %v2334, 2
        %v2434 = vsel %vm1312, %v2431, %v2433
        %v2435 = vrot.slane %v2335, 2
        %v2436 = vrot.slane %v2336, 2
        %v2437 = vsel %vm1312, %v2435, %v2436
        %v2438 = vrot.slane %v2337, 2
        %v2439 = vsel %vm1312, %v2436, %v2438
        %v2440 = vrot.slane %v2338, 2
        %v2441 = vrot.slane %v2339, 2
        %v2442 = vsel %vm1312, %v2440, %v2441
        %v2443 = vrot.slane %v2340, 2
        %v2444 = vsel %vm1312, %v2441, %v2443
        %v2445 = vrot.slane %v2341, 2
        %v2446 = vrot.slane %v2342, 2
        %v2447 = vsel %vm1312, %v2445, %v2446
        %v2448 = vrot.slane %v2343, 2
        %v2449 = vsel %vm1312, %v2446, %v2448
        %v2450 = vrot.slane %v2344, 2
        %v2451 = vrot.slane %v2345, 2
        %v2452 = vsel %vm1312, %v2450, %v2451
        %v2453 = vrot.slane %v2346, 2
        %v2454 = vsel %vm1312, %v2451, %v2453
        %v2455 = vrot.slane %v2347, 2
        %v2456 = vrot.slane %v2348, 2
        %v2457 = vsel %vm1312, %v2455, %v2456
        %v2458 = vrot.slane %v2349, 2
        %v2459 = vsel %vm1312, %v2456, %v2458
        %v2460 = vrot.slane %v2350, 2
        %v2461 = vrot.slane %v2351, 2
        %v2462 = vsel %vm1312, %v2460, %v2461
        %v2463 = vrot.slane %v2352, 2
        %v2464 = vsel %vm1312, %v2461, %v2463
        %v2465 = vrot.slane %v2353, 2
        %v2466 = vrot.slane %v2354, 2
        %v2467 = vsel %vm1312, %v2465, %v2466
        %v2468 = vrot.slane %v2355, 2
        %v2469 = vsel %vm1312, %v2466, %v2468
        %v2470 = vrot.slane %v2356, 2
        %v2471 = vrot.slane %v2357, 2
        %v2472 = vsel %vm1312, %v2470, %v2471
        %v2473 = vrot.slane %v2358, 2
        %v2474 = vsel %vm1312, %v2471, %v2473
        %v2475 = vrot.slane %v2359, 2
        %v2476 = vrot.slane %v2360, 2
        %v2477 = vsel %vm1312, %v2475, %v2476
        %v2478 = vrot.slane %v2361, 2
        %v2479 = vsel %vm1312, %v2476, %v2478
        %v2480 = vrot.slane %v2362, 2
        %v2481 = vrot.slane %v2363, 2
        %v2482 = vsel %vm1312, %v2480, %v2481
        %v2483 = vrot.slane %v2364, 2
        %v2484 = vsel %vm1312, %v2481, %v2483
        %v2485 = vrot.slane %v2365, 2
        %v2486 = vrot.slane %v2366, 2
        %v2487 = vsel %vm1312, %v2485, %v2486
        %v2488 = vrot.slane %v2367, 2
        %v2489 = vsel %vm1312, %v2486, %v2488
        %v2490 = vrot.slane %v2368, 2
        %v2491 = vrot.slane %v2369, 2
        %v2492 = vsel %vm1312, %v2490, %v2491
        %v2493 = vrot.slane %v2370, 2
        %v2494 = vsel %vm1312, %v2491, %v2493
        %v2495 = vrot.slane %v2371, 2
        %v2496 = vrot.slane %v2372, 2
        %v2497 = vsel %vm1312, %v2495, %v2496
        %v2498 = vrot.slane %v2373, 2
        %v2499 = vsel %vm1312, %v2496, %v2498
        %v2500 = vrot.slane %v2374, 2
        %v2501 = vrot.slane %v2375, 2
        %v2502 = vsel %vm1312, %v2500, %v2501
        %v2503 = vrot.slane %v2376, 2
        %v2504 = vsel %vm1312, %v2501, %v2503
        %v2537 = vadd.f32 %v2293, %v2427
        %v2538 = vadd.f32 %v2294, %v2429
        %v2539 = vadd.f32 %v2295, %v2432
        %v2540 = vadd.f32 %v2296, %v2434
        %v2541 = vadd.f32 %v2297, %v2437
        %v2542 = vadd.f32 %v2298, %v2439
        %v2543 = vadd.f32 %v2299, %v2442
        %v2544 = vadd.f32 %v2300, %v2444
        %v2545 = vadd.f32 %v2301, %v2447
        %v2546 = vadd.f32 %v2302, %v2449
        %v2547 = vadd.f32 %v2303, %v2452
        %v2548 = vadd.f32 %v2304, %v2454
        %v2549 = vadd.f32 %v2305, %v2457
        %v2550 = vadd.f32 %v2306, %v2459
        %v2551 = vadd.f32 %v2307, %v2462
        %v2552 = vadd.f32 %v2308, %v2464
        %v2553 = vadd.f32 %v2309, %v2467
        %v2554 = vadd.f32 %v2310, %v2469
        %v2555 = vadd.f32 %v2311, %v2472
        %v2556 = vadd.f32 %v2312, %v2474
        %v2557 = vadd.f32 %v2313, %v2477
        %v2558 = vadd.f32 %v2314, %v2479
        %v2559 = vadd.f32 %v2315, %v2482
        %v2560 = vadd.f32 %v2316, %v2484
        %v2561 = vadd.f32 %v2317, %v2487
        %v2562 = vadd.f32 %v2318, %v2489
        %v2563 = vadd.f32 %v2319, %v2492
        %v2564 = vadd.f32 %v2320, %v2494
        %v2565 = vadd.f32 %v2321, %v2497
        %v2566 = vadd.f32 %v2322, %v2499
        %v2567 = vadd.f32 %v2323, %v2502
        %v2568 = vadd.f32 %v2324, %v2504
        %v2569 = vld [vmem:[%s5] sm:$0x1]
        %v2571 = vlaneseq
        %v2572 = vshrl.u32 %v2571, 7
        %v2573 = vsub.s32 0, %v2572
        %v2574 = vrot.slane %v2569, %v2573
        %v2576 = vmul.f32 %v2537, %v2574
        %v2577 = vmul.f32 %v2538, %v2574
        %v2578 = vmul.f32 %v2539, %v2574
        %v2579 = vmul.f32 %v2540, %v2574
        %v2580 = vmul.f32 %v2541, %v2574
        %v2581 = vmul.f32 %v2542, %v2574
        %v2582 = vmul.f32 %v2543, %v2574
        %v2583 = vmul.f32 %v2544, %v2574
        %v2584 = vmul.f32 %v2545, %v2574
        %v2585 = vmul.f32 %v2546, %v2574
        %v2586 = vmul.f32 %v2547, %v2574
        %v2587 = vmul.f32 %v2548, %v2574
        %v2588 = vmul.f32 %v2549, %v2574
        %v2589 = vmul.f32 %v2550, %v2574
        %v2590 = vmul.f32 %v2551, %v2574
        %v2591 = vmul.f32 %v2552, %v2574
        %v2592 = vmul.f32 %v2553, %v2574
        %v2593 = vmul.f32 %v2554, %v2574
        %v2594 = vmul.f32 %v2555, %v2574
        %v2595 = vmul.f32 %v2556, %v2574
        %v2596 = vmul.f32 %v2557, %v2574
        %v2597 = vmul.f32 %v2558, %v2574
        %v2598 = vmul.f32 %v2559, %v2574
        %v2599 = vmul.f32 %v2560, %v2574
        %v2600 = vmul.f32 %v2561, %v2574
        %v2601 = vmul.f32 %v2562, %v2574
        %v2602 = vmul.f32 %v2563, %v2574
        %v2603 = vmul.f32 %v2564, %v2574
        %v2604 = vmul.f32 %v2565, %v2574
        %v2605 = vmul.f32 %v2566, %v2574
        %v2606 = vmul.f32 %v2567, %v2574
        %v2607 = vmul.f32 %v2568, %v2574
        %v2608 = vld [vmem:[%s6] sm:$0x1]
        %v2610 = vlaneseq
        %v2611 = vshrl.u32 %v2610, 7
        %v2612 = vsub.s32 0, %v2611
        %v2613 = vrot.slane %v2608, %v2612
        %v2615 = vadd.f32 %v2576, %v2613
        %v2616 = vadd.f32 %v2577, %v2613
        %v2617 = vadd.f32 %v2578, %v2613
        %v2618 = vadd.f32 %v2579, %v2613
        %v2619 = vadd.f32 %v2580, %v2613
        %v2620 = vadd.f32 %v2581, %v2613
        %v2621 = vadd.f32 %v2582, %v2613
        %v2622 = vadd.f32 %v2583, %v2613
        %v2623 = vadd.f32 %v2584, %v2613
        %v2624 = vadd.f32 %v2585, %v2613
        %v2625 = vadd.f32 %v2586, %v2613
        %v2626 = vadd.f32 %v2587, %v2613
        %v2627 = vadd.f32 %v2588, %v2613
        %v2628 = vadd.f32 %v2589, %v2613
        %v2629 = vadd.f32 %v2590, %v2613
        %v2630 = vadd.f32 %v2591, %v2613
        %v2631 = vadd.f32 %v2592, %v2613
        %v2632 = vadd.f32 %v2593, %v2613
        %v2633 = vadd.f32 %v2594, %v2613
        %v2634 = vadd.f32 %v2595, %v2613
        %v2635 = vadd.f32 %v2596, %v2613
        %v2636 = vadd.f32 %v2597, %v2613
        %v2637 = vadd.f32 %v2598, %v2613
        %v2638 = vadd.f32 %v2599, %v2613
        %v2639 = vadd.f32 %v2600, %v2613
        %v2640 = vadd.f32 %v2601, %v2613
        %v2641 = vadd.f32 %v2602, %v2613
        %v2642 = vadd.f32 %v2603, %v2613
        %v2643 = vadd.f32 %v2604, %v2613
        %v2644 = vadd.f32 %v2605, %v2613
        %v2645 = vadd.f32 %v2606, %v2613
        %v2646 = vadd.f32 %v2607, %v2613
        %v2647 = vmax.f32 %v2615, 0.0
        %v2648 = vmax.f32 %v2616, 0.0
        %v2649 = vmax.f32 %v2617, 0.0
        %v2650 = vmax.f32 %v2618, 0.0
        %v2651 = vmax.f32 %v2619, 0.0
        %v2652 = vmax.f32 %v2620, 0.0
        %v2653 = vmax.f32 %v2621, 0.0
        %v2654 = vmax.f32 %v2622, 0.0
        %v2655 = vmax.f32 %v2623, 0.0
        %v2656 = vmax.f32 %v2624, 0.0
        %v2657 = vmax.f32 %v2625, 0.0
        %v2658 = vmax.f32 %v2626, 0.0
        %v2659 = vmax.f32 %v2627, 0.0
        %v2660 = vmax.f32 %v2628, 0.0
        %v2661 = vmax.f32 %v2629, 0.0
        %v2662 = vmax.f32 %v2630, 0.0
        %v2663 = vmax.f32 %v2631, 0.0
        %v2664 = vmax.f32 %v2632, 0.0
        %v2665 = vmax.f32 %v2633, 0.0
        %v2666 = vmax.f32 %v2634, 0.0
        %v2667 = vmax.f32 %v2635, 0.0
        %v2668 = vmax.f32 %v2636, 0.0
        %v2669 = vmax.f32 %v2637, 0.0
        %v2670 = vmax.f32 %v2638, 0.0
        %v2671 = vmax.f32 %v2639, 0.0
        %v2672 = vmax.f32 %v2640, 0.0
        %v2673 = vmax.f32 %v2641, 0.0
        %v2674 = vmax.f32 %v2642, 0.0
        %v2675 = vmax.f32 %v2643, 0.0
        %v2676 = vmax.f32 %v2644, 0.0
        %v2677 = vmax.f32 %v2645, 0.0
        %v2678 = vmax.f32 %v2646, 0.0
        %v2679 = vpack.c.bf16 %v2648, %v2647
        %v2680 = vpack.c.bf16 %v2650, %v2649
        %v2681 = vpack.c.bf16 %v2652, %v2651
        %v2682 = vpack.c.bf16 %v2654, %v2653
        %v2683 = vpack.c.bf16 %v2656, %v2655
        %v2684 = vpack.c.bf16 %v2658, %v2657
        %v2685 = vpack.c.bf16 %v2660, %v2659
        %v2686 = vpack.c.bf16 %v2662, %v2661
        %v2687 = vpack.c.bf16 %v2664, %v2663
        %v2688 = vpack.c.bf16 %v2666, %v2665
        %v2689 = vpack.c.bf16 %v2668, %v2667
        %v2690 = vpack.c.bf16 %v2670, %v2669
        %v2691 = vpack.c.bf16 %v2672, %v2671
        %v2692 = vpack.c.bf16 %v2674, %v2673
        %v2693 = vpack.c.bf16 %v2676, %v2675
        %v2694 = vpack.c.bf16 %v2678, %v2677
        %v2711 = vunpack.c.l.b16 %v2679
        %v2712 = vunpack.c.h.b16 %v2679
        %v2713 = vunpack.c.l.b16 %v2680
        %v2714 = vunpack.c.h.b16 %v2680
        %v2715 = vunpack.c.l.b16 %v2681
        %v2716 = vunpack.c.h.b16 %v2681
        %v2717 = vunpack.c.l.b16 %v2682
        %v2718 = vunpack.c.h.b16 %v2682
        %v2719 = vunpack.c.l.b16 %v2683
        %v2720 = vunpack.c.h.b16 %v2683
        %v2721 = vunpack.c.l.b16 %v2684
        %v2722 = vunpack.c.h.b16 %v2684
        %v2723 = vunpack.c.l.b16 %v2685
        %v2724 = vunpack.c.h.b16 %v2685
        %v2725 = vunpack.c.l.b16 %v2686
        %v2726 = vunpack.c.h.b16 %v2686
        %v2727 = vunpack.c.l.b16 %v2687
        %v2728 = vunpack.c.h.b16 %v2687
        %v2729 = vunpack.c.l.b16 %v2688
        %v2730 = vunpack.c.h.b16 %v2688
        %v2731 = vunpack.c.l.b16 %v2689
        %v2732 = vunpack.c.h.b16 %v2689
        %v2733 = vunpack.c.l.b16 %v2690
        %v2734 = vunpack.c.h.b16 %v2690
        %v2735 = vunpack.c.l.b16 %v2691
        %v2736 = vunpack.c.h.b16 %v2691
        %v2737 = vunpack.c.l.b16 %v2692
        %v2738 = vunpack.c.h.b16 %v2692
        %v2739 = vunpack.c.l.b16 %v2693
        %v2740 = vunpack.c.h.b16 %v2693
        %v2741 = vunpack.c.l.b16 %v2694
        %v2742 = vunpack.c.h.b16 %v2694
        %v2743 = vpack.c.b16 %v2711, %v2711
        %v2744 = vpack.c.b16 %v2712, %v2712
        %v2745 = vpack.c.b16 %v2713, %v2713
        %v2746 = vpack.c.b16 %v2714, %v2714
        %v2747 = vpack.c.b16 %v2715, %v2715
        %v2748 = vpack.c.b16 %v2716, %v2716
        %v2749 = vpack.c.b16 %v2717, %v2717
        %v2750 = vpack.c.b16 %v2718, %v2718
        %v2751 = vpack.c.b16 %v2719, %v2719
        %v2752 = vpack.c.b16 %v2720, %v2720
        %v2753 = vpack.c.b16 %v2721, %v2721
        %v2754 = vpack.c.b16 %v2722, %v2722
        %v2755 = vpack.c.b16 %v2723, %v2723
        %v2756 = vpack.c.b16 %v2724, %v2724
        %v2757 = vpack.c.b16 %v2725, %v2725
        %v2758 = vpack.c.b16 %v2726, %v2726
        %v2759 = vpack.c.b16 %v2727, %v2727
        %v2760 = vpack.c.b16 %v2728, %v2728
        %v2761 = vpack.c.b16 %v2729, %v2729
        %v2762 = vpack.c.b16 %v2730, %v2730
        %v2763 = vpack.c.b16 %v2731, %v2731
        %v2764 = vpack.c.b16 %v2732, %v2732
        %v2765 = vpack.c.b16 %v2733, %v2733
        %v2766 = vpack.c.b16 %v2734, %v2734
        %v2767 = vpack.c.b16 %v2735, %v2735
        %v2768 = vpack.c.b16 %v2736, %v2736
        %v2769 = vpack.c.b16 %v2737, %v2737
        %v2770 = vpack.c.b16 %v2738, %v2738
        %v2771 = vpack.c.b16 %v2739, %v2739
        %v2772 = vpack.c.b16 %v2740, %v2740
        %v2773 = vpack.c.b16 %v2741, %v2741
        %v2774 = vpack.c.b16 %v2742, %v2742
        %vm2807 = vcmask 257024
        %2808 = vst.msk [vmem:[%s315] sm:$0xf] %vm2807, %v2743
        %2809 = vst.msk [vmem:[%s315 + $0x4] sm:$0xf] %vm2807, %v2744
        %2810 = vst.msk [vmem:[%s315 + $0x8] sm:$0xf] %vm2807, %v2745
        %2811 = vst.msk [vmem:[%s315 + $0xc] sm:$0xf] %vm2807, %v2746
        %2812 = vst.msk [vmem:[%s315 + $0x10] sm:$0xf] %vm2807, %v2747
        %2813 = vst.msk [vmem:[%s315 + $0x14] sm:$0xf] %vm2807, %v2748
        %2814 = vst.msk [vmem:[%s315 + $0x18] sm:$0xf] %vm2807, %v2749
        %2815 = vst.msk [vmem:[%s315 + $0x1c] sm:$0xf] %vm2807, %v2750
        %2816 = vst.msk [vmem:[%s315 + $0x20] sm:$0xf] %vm2807, %v2751
        %2817 = vst.msk [vmem:[%s315 + $0x24] sm:$0xf] %vm2807, %v2752
        %2818 = vst.msk [vmem:[%s315 + $0x28] sm:$0xf] %vm2807, %v2753
        %2819 = vst.msk [vmem:[%s315 + $0x2c] sm:$0xf] %vm2807, %v2754
        %2820 = vst.msk [vmem:[%s315 + $0x30] sm:$0xf] %vm2807, %v2755
        %2821 = vst.msk [vmem:[%s315 + $0x34] sm:$0xf] %vm2807, %v2756
        %2822 = vst.msk [vmem:[%s315 + $0x38] sm:$0xf] %vm2807, %v2757
        %2823 = vst.msk [vmem:[%s315 + $0x3c] sm:$0xf] %vm2807, %v2758
        %2824 = vst.msk [vmem:[%s315 + $0x40] sm:$0xf] %vm2807, %v2759
        %2825 = vst.msk [vmem:[%s315 + $0x44] sm:$0xf] %vm2807, %v2760
        %2826 = vst.msk [vmem:[%s315 + $0x48] sm:$0xf] %vm2807, %v2761
        %2827 = vst.msk [vmem:[%s315 + $0x4c] sm:$0xf] %vm2807, %v2762
        %2828 = vst.msk [vmem:[%s315 + $0x50] sm:$0xf] %vm2807, %v2763
        %2829 = vst.msk [vmem:[%s315 + $0x54] sm:$0xf] %vm2807, %v2764
        %2830 = vst.msk [vmem:[%s315 + $0x58] sm:$0xf] %vm2807, %v2765
        %2831 = vst.msk [vmem:[%s315 + $0x5c] sm:$0xf] %vm2807, %v2766
        %2832 = vst.msk [vmem:[%s315 + $0x60] sm:$0xf] %vm2807, %v2767
        %2833 = vst.msk [vmem:[%s315 + $0x64] sm:$0xf] %vm2807, %v2768
        %2834 = vst.msk [vmem:[%s315 + $0x68] sm:$0xf] %vm2807, %v2769
        %2835 = vst.msk [vmem:[%s315 + $0x6c] sm:$0xf] %vm2807, %v2770
        %2836 = vst.msk [vmem:[%s315 + $0x70] sm:$0xf] %vm2807, %v2771
        %2837 = vst.msk [vmem:[%s315 + $0x74] sm:$0xf] %vm2807, %v2772
        %2838 = vst.msk [vmem:[%s315 + $0x78] sm:$0xf] %vm2807, %v2773
        %2839 = vst.msk [vmem:[%s315 + $0x7c] sm:$0xf] %vm2807, %v2774
        %v2840 = vsel %vm754, %v2647, 0.0
        %v2841 = vsel %vm754, %v2648, 0.0
        %v2842 = vadd.f32 %v2840, %v2841
        %v2843 = vsel %vm754, %v2649, 0.0
        %v2844 = vadd.f32 %v2842, %v2843
        %v2845 = vsel %vm754, %v2650, 0.0
        %v2846 = vadd.f32 %v2844, %v2845
        %v2847 = vsel %vm754, %v2651, 0.0
        %v2848 = vadd.f32 %v2846, %v2847
        %v2849 = vsel %vm754, %v2652, 0.0
        %v2850 = vadd.f32 %v2848, %v2849
        %v2851 = vsel %vm754, %v2653, 0.0
        %v2852 = vadd.f32 %v2850, %v2851
        %v2853 = vsel %vm754, %v2654, 0.0
        %v2854 = vadd.f32 %v2852, %v2853
        %v2855 = vsel %vm754, %v2655, 0.0
        %v2856 = vadd.f32 %v2854, %v2855
        %v2857 = vsel %vm754, %v2656, 0.0
        %v2858 = vadd.f32 %v2856, %v2857
        %v2859 = vsel %vm754, %v2657, 0.0
        %v2860 = vadd.f32 %v2858, %v2859
        %v2861 = vsel %vm754, %v2658, 0.0
        %v2862 = vadd.f32 %v2860, %v2861
        %v2863 = vsel %vm754, %v2659, 0.0
        %v2864 = vadd.f32 %v2862, %v2863
        %v2865 = vsel %vm754, %v2660, 0.0
        %v2866 = vadd.f32 %v2864, %v2865
        %v2867 = vsel %vm754, %v2661, 0.0
        %v2868 = vadd.f32 %v2866, %v2867
        %v2869 = vsel %vm754, %v2662, 0.0
        %v2870 = vadd.f32 %v2868, %v2869
        %v2871 = vsel %vm754, %v2663, 0.0
        %v2872 = vadd.f32 %v2870, %v2871
        %v2873 = vsel %vm754, %v2664, 0.0
        %v2874 = vadd.f32 %v2872, %v2873
        %v2875 = vsel %vm754, %v2665, 0.0
        %v2876 = vadd.f32 %v2874, %v2875
        %v2877 = vsel %vm754, %v2666, 0.0
        %v2878 = vadd.f32 %v2876, %v2877
        %v2879 = vsel %vm754, %v2667, 0.0
        %v2880 = vadd.f32 %v2878, %v2879
        %v2881 = vsel %vm754, %v2668, 0.0
        %v2882 = vadd.f32 %v2880, %v2881
        %v2883 = vsel %vm754, %v2669, 0.0
        %v2884 = vadd.f32 %v2882, %v2883
        %v2885 = vsel %vm754, %v2670, 0.0
        %v2886 = vadd.f32 %v2884, %v2885
        %v2887 = vsel %vm754, %v2671, 0.0
        %v2888 = vadd.f32 %v2886, %v2887
        %v2889 = vsel %vm754, %v2672, 0.0
        %v2890 = vadd.f32 %v2888, %v2889
        %v2891 = vsel %vm754, %v2673, 0.0
        %v2892 = vadd.f32 %v2890, %v2891
        %v2893 = vsel %vm754, %v2674, 0.0
        %v2894 = vadd.f32 %v2892, %v2893
        %v2895 = vsel %vm754, %v2675, 0.0
        %v2896 = vadd.f32 %v2894, %v2895
        %v2897 = vsel %vm754, %v2676, 0.0
        %v2898 = vadd.f32 %v2896, %v2897
        %v2899 = vsel %vm754, %v2677, 0.0
        %v2900 = vadd.f32 %v2898, %v2899
        %v2901 = vsel %vm754, %v2678, 0.0
        %v2902 = vadd.f32 %v2900, %v2901
        %v2903 = vrot.slane %v2902, 4
        %v2904 = vadd.f32 %v2902, %v2903
        %v2905 = vrot.slane %v2904, 2
        %v2906 = vadd.f32 %v2904, %v2905
        %v2907 = vrot.slane %v2906, 1
        %v2908 = vadd.f32 %v2906, %v2907
        %vm2909 = vcmask 253952
        %2910 = vst.msk [vmem:[%s305] sm:$0x1] %vm2909, %v2908
        %p2911 = scmp.lt.s32.totalorder %s23, 1
        %s2912 = scalar_select %p2911, %s23, 1
        %s2913 = smul.addr %s2912, 32
        %s2914 = smul.addr %s2913, 4
        %s2915 = scalar_lea.vmem %s7, %s2914
        %s2916 = sand.u32 %s209, 1
        %s2917 = scalar_lea.sflag [#allocation4], %s2916
        %s2918 = sand.u32 %s209, 1
        %s2919 = scalar_lea.vmem [#allocation3], %s2918
        // Predicated region
        $region49: #{tpu_custom_call.1} parent=47 // pred_check
          %p2920 = pneg %p193
        $region50: #{tpu_custom_call.1} parent=47 // pred_check_branch
          %2922 = sbr.rel (%p2920) target = $region52
        $region51: #{tpu_custom_call.1} parent=47 // pred_region
          _
        $region52: #{tpu_custom_call.1} parent=47 // pred_fallthru
          _
        // Predicated region
        $region53: #{tpu_custom_call.1} parent=47 // pred_check
          %p2923 = pneg %p219
        $region54: #{tpu_custom_call.1} parent=47 // pred_check_branch
          %2925 = sbr.rel (%p2923) target = $region56
        $region55: #{tpu_custom_call.1} parent=47 // pred_region
          %s2927 = ssub.s32 16, 16
          %2928 = vsyncadd %s2917, %s2927
          %s2929 = smul.addr %s23, 16
          %s2930 = scalar_lea.hbm %s8, %s2929
          %s2932 = sshll.u32 %s2919, 4
          %s2933 = int_to_ptr.vmem [resolvable:$true] %s2932
          %2935 = dma.vmem_to_hbm [thread:$0]  %s2933, 16, %s2930, %s2917
        $region56: #{tpu_custom_call.1} parent=47 // pred_fallthru
          _
      $region48: #{tpu_custom_call.1} parent=5 // pred_fallthru
        _
      %p2936 = scmp.le.s32.totalorder 2, %s18
      // Predicated region
      $region57: #{tpu_custom_call.1} parent=5 // pred_check
        %p2937 = pneg %p2936
      $region58: #{tpu_custom_call.1} parent=5 // pred_check_branch
        %2939 = sbr.rel (%p2937) target = $region60
      $region59: #{tpu_custom_call.1} parent=5 // pred_region
        %s2940 = ssub.s32 %s18, 2
        // Predicated region
        $region61: #{tpu_custom_call.1} parent=59 // pred_check
          %p2941 = pneg %p199
        $region62: #{tpu_custom_call.1} parent=59 // pred_check_branch
          %2943 = sbr.rel (%p2941) target = $region64
        $region63: #{tpu_custom_call.1} parent=59 // pred_region
          %p2944 = scmp.lt.s32.totalorder %s24, 1
          %s2945 = scalar_select %p2944, %s24, 1
          %s2946 = smul.addr %s2945, 32
          %s2947 = smul.addr %s2946, 4
          %s2948 = scalar_lea.vmem %s7, %s2947
        $region64: #{tpu_custom_call.1} parent=59 // pred_fallthru
          _
        // Predicated region
        $region65: #{tpu_custom_call.1} parent=59 // pred_check
          %p2949 = pneg %p225
        $region66: #{tpu_custom_call.1} parent=59 // pred_check_branch
          %2951 = sbr.rel (%p2949) target = $region68
        $region67: #{tpu_custom_call.1} parent=59 // pred_region
          %s2952 = sand.u32 %s210, 1
          %s2953 = scalar_lea.sflag [#allocation4], %s2952
          %s2954 = sand.u32 %s210, 1
          %s2955 = scalar_lea.vmem [#allocation3], %s2954
          %2956 = dma.done %s2953, 16
        $region68: #{tpu_custom_call.1} parent=59 // pred_fallthru
          _
      $region60: #{tpu_custom_call.1} parent=5 // pred_fallthru
        _
    $region6: #{tpu_custom_call.1} parent=1 // loop_footer
      %s22 = sadd.s32 1, %s18
    $region7: #{tpu_custom_call.1} parent=1 // loop_footer_branch
      %17 = sbr.rel target = $region3
    $region8: #{tpu_custom_call.1} parent=1 // loop_exit
      _
    %2957 = vsyncpa [#allocation4], 1
    %s2958 = scalar_lea.sflag [#allocation4], 1
    %2959 = vsyncpa %s2958, 1

</llo_original>
